<compile_context>
chip_gen: v6e
topology: v6e:2x2x1
jax: 0.10.0
libtpu: 0.0.40
codegen_flags: <defaults>
</compile_context>

<pallas_src>
import functools
import math

import jax
import jax.numpy as jnp
from jax.experimental import pallas as pl
from jax.experimental.pallas import tpu as pltpu

LANE = 128      # last-dim (lane) multiple
SUBLANE = 8     # second-to-last (sublane) multiple for f32


def _round_up(x, m):
    return ((x + m - 1) // m) * m


def _vmem_capacity_bytes():
    """Per-core VMEM capacity; conservative (v7x, 64 MiB) default if the query fails."""
    try:
        return int(pltpu.get_tpu_info().vmem_capacity_bytes)
    except Exception:
        return 64 << 20


# --------------------------------------------------------------------------------------
# Fused kernel: entire MLP for one batch tile.
# refs = (x, w0, b0, w1, b1, ..., wL-1, bL-1, out)
# --------------------------------------------------------------------------------------
def _fused_mlp_kernel(*refs, num_layers: int):
    x_ref = refs[0]
    o_ref = refs[-1]
    wb_refs = refs[1:-1]
    compute_dtype = wb_refs[0].dtype

    x = x_ref[...]                              # native compute dtype (f32 or bf16)
    for l in range(num_layers):                 # static Python loop (layer shapes are static)
        w = wb_refs[2 * l][...]                 # [in_pad_l, out_pad_l]  (pre-transposed)
        b = wb_refs[2 * l + 1][...]             # [1, out_pad_l] f32
        y = jnp.dot(x, w, preferred_element_type=jnp.float32)   # MXU, f32 accumulation
        y = y + b                               # f32 epilogue on VPU
        if l < num_layers - 1:
            y = jnp.maximum(y, 0.0)             # ReLU on hidden layers only
            x = y.astype(compute_dtype)         # back to compute dtype between layers
        else:
            x = y
    o_ref[...] = x.astype(o_ref.dtype)


# --------------------------------------------------------------------------------------
# Streamed fallback: one tiled-matmul pallas_call per layer (weights streamed tile-by-tile).
# --------------------------------------------------------------------------------------
def _linear_kernel(x_ref, w_ref, b_ref, o_ref, acc_ref, *, apply_relu: bool):
    k = pl.program_id(2)

    @pl.when(k == 0)
    def _():
        acc_ref[...] = jnp.zeros_like(acc_ref)

    acc_ref[...] += jnp.dot(x_ref[...], w_ref[...], preferred_element_type=jnp.float32)

    @pl.when(k == pl.num_programs(2) - 1)
    def _():
        y = acc_ref[...] + b_ref[...]
        if apply_relu:
            y = jnp.maximum(y, 0.0)
        o_ref[...] = y.astype(o_ref.dtype)


def _tiled_linear(x_p, w, b, *, apply_relu, out_dtype, tm, vmem_limit):
    b_pad, in_pad = x_p.shape
    _, out_pad = w.shape
    tk = 512 if in_pad % 512 == 0 else (256 if in_pad % 256 == 0 else 128)
    tn = 256 if out_pad % 256 == 0 else 128
    grid = (b_pad // tm, out_pad // tn, in_pad // tk)
    kernel = functools.partial(_linear_kernel, apply_relu=apply_relu)
    return pl.pallas_call(
        kernel,
        out_shape=jax.ShapeDtypeStruct((b_pad, out_pad), out_dtype),
        grid=grid,
        in_specs=[pl.BlockSpec((tm, tk), lambda i, j, k: (i, k)),
                  pl.BlockSpec((tk, tn), lambda i, j, k: (k, j)),
                  pl.BlockSpec((1, tn), lambda i, j, k: (0, j))],
        out_specs=pl.BlockSpec((tm, tn), lambda i, j, k: (i, j)),
        scratch_shapes=[pltpu.VMEM((tm, tn), jnp.float32)],
        compiler_params=pltpu.CompilerParams(
            dimension_semantics=("parallel", "parallel", "arbitrary"),
            vmem_limit_bytes=vmem_limit),
    )(x_p, w, b)


def _streamed_mlp(x, padded_params, out_features, out_dtype, vmem_limit):
    batch, in_f = x.shape
    num_layers = len(padded_params)
    compute_dtype = padded_params[0][0].dtype
    in_pad0 = padded_params[0][0].shape[0]
    out_pad_last = padded_params[-1][0].shape[1]

    tm = min(256, _round_up(batch, SUBLANE))
    batch_pad = _round_up(batch, tm)
    if (batch_pad, in_pad0) != (batch, in_f) or x.dtype != compute_dtype:
        x_p = jnp.zeros((batch_pad, in_pad0), compute_dtype).at[:batch, :in_f].set(
            x.astype(compute_dtype))
    else:
        x_p = x

    for l, (w, b) in enumerate(padded_params):
        last = (l == num_layers - 1)
        x_p = _tiled_linear(x_p, w, b,
                            apply_relu=not last,
                            out_dtype=out_dtype if last else compute_dtype,
                            tm=tm, vmem_limit=vmem_limit)

    if batch_pad == batch and out_pad_last == out_features:
        return x_p
    return x_p[:batch, :out_features]


# --------------------------------------------------------------------------------------
# Parameter preparation: torch-style (w [out,in], b [out]) -> padded [in_pad, out_pad], [1, out_pad].
# Zero padding is exact: padded input columns hit zero weight rows, padded output columns get
# zero bias (and stay zero through ReLU), so the valid region is untouched.
# --------------------------------------------------------------------------------------
def prepare_params(params, compute_dtype=None, lane=LANE):
    prepped = []
    for w, b in params:
        out_f, in_f = w.shape
        in_pad = _round_up(in_f, lane)
        out_pad = _round_up(out_f, lane)
        w_dtype = compute_dtype if compute_dtype is not None else w.dtype
        w_t = jnp.zeros((in_pad, out_pad), w_dtype).at[:in_f, :out_f].set(w.T.astype(w_dtype))
        b_p = jnp.zeros((1, out_pad), jnp.float32).at[:, :out_f].set(
            b.reshape(1, -1).astype(jnp.float32))
        prepped.append((w_t, b_p))
    return prepped


# --------------------------------------------------------------------------------------
# VMEM accounting & tile selection
# --------------------------------------------------------------------------------------
def _vmem_bytes_fused(tile_b, padded_params, act_itemsize):
    in_pad0 = padded_params[0][0].shape[0]
    out_pad_last = padded_params[-1][0].shape[1]
    # x / out tiles: double-buffered (default BlockSpec pipelining).
    io = 2 * tile_b * in_pad0 * act_itemsize + 2 * tile_b * out_pad_last * 4
    # weights / biases: single-buffered (pl.Buffered(1)), resident.
    wb = sum(w.size * w.dtype.itemsize + b.size * b.dtype.itemsize for w, b in padded_params)
    # worst-layer in-flight activations: layer input (compute dtype) + f32 matmul output.
    inter = max(tile_b * w.shape[0] * act_itemsize + tile_b * w.shape[1] * 4
                for w, _ in padded_params)
    return io + wb + inter


def _pick_tile_b(batch, padded_params, act_itemsize, budget, row_align):
    cap_b = _round_up(batch, row_align)
    cands = {c for c in (512, 256, 128, 64, 32, 16, 8) if c <= cap_b and c % row_align == 0}
    cands.add(cap_b)
    for t in sorted(cands, reverse=True):
        if _vmem_bytes_fused(t, padded_params, act_itemsize) <= budget:
            return t
    return None


def _const_param_specs(padded_params, single_buffer):
    specs = []
    for w, b in padded_params:
        if single_buffer:
            specs.append(pl.BlockSpec(w.shape, lambda i: (0, 0), pipeline_mode=pl.Buffered(1)))
            specs.append(pl.BlockSpec(b.shape, lambda i: (0, 0), pipeline_mode=pl.Buffered(1)))
        else:
            specs.append(pl.BlockSpec(w.shape, lambda i: (0, 0)))
            specs.append(pl.BlockSpec(b.shape, lambda i: (0, 0)))
    return specs


# --------------------------------------------------------------------------------------
# Wrapper
# --------------------------------------------------------------------------------------
def fused_mlp(x, padded_params, out_features, *, tile_b=None, force_streaming=False,
              vmem_cap_bytes=None):
    batch, in_f = x.shape
    num_layers = len(padded_params)
    compute_dtype = padded_params[0][0].dtype
    act_itemsize = jnp.dtype(compute_dtype).itemsize
    in_pad = padded_params[0][0].shape[0]
    out_pad_last = padded_params[-1][0].shape[1]
    out_dtype = x.dtype

    cap = vmem_cap_bytes if vmem_cap_bytes is not None else _vmem_capacity_bytes()
    vmem_limit = max(int(cap * 0.85), 16 << 20)      # generation-aware scoped limit
    plan_budget = int(cap * 0.75)                    # plan with headroom below the limit
    row_align = 8 if act_itemsize >= 4 else (16 if act_itemsize == 2 else 32)

    if tile_b is None:
        tile_b = _pick_tile_b(batch, padded_params, act_itemsize, plan_budget, row_align)

    if not force_streaming and tile_b is not None:
        batch_pad = _round_up(batch, tile_b)
        needs_pad = (batch_pad != batch) or (in_pad != in_f)
        if needs_pad:
            x_p = jnp.zeros((batch_pad, in_pad), compute_dtype).at[:batch, :in_f].set(
                x.astype(compute_dtype))
        else:
            x_p = x if x.dtype == compute_dtype else x.astype(compute_dtype)

        grid = (batch_pad // tile_b,)
        flat_args = []
        for w, b in padded_params:
            flat_args.extend([w, b])
        kernel = functools.partial(_fused_mlp_kernel, num_layers=num_layers)
        x_spec = pl.BlockSpec((tile_b, in_pad), lambda i: (i, 0))
        out_specs = pl.BlockSpec((tile_b, out_pad_last), lambda i: (i, 0))
        out_shape = jax.ShapeDtypeStruct((batch_pad, out_pad_last), out_dtype)

        # Try single-buffered resident weights first, then default buffering; if the fused
        # resident kernel cannot be built/compiled, fall through to the streamed path.
        for single_buffer in (True, False):
            try:
                in_specs = [x_spec] + _const_param_specs(padded_params, single_buffer)
                y_pad = pl.pallas_call(
                    kernel,
                    out_shape=out_shape,
                    grid=grid,
                    in_specs=in_specs,
                    out_specs=out_specs,
                    compiler_params=pltpu.CompilerParams(
                        dimension_semantics=("parallel",),   # batch grid shards across TCs
                        vmem_limit_bytes=vmem_limit,
                    ),
                )(x_p, *flat_args)
                if batch_pad == batch and out_pad_last == out_features:
                    return y_pad
                return y_pad[:batch, :out_features]
            except Exception:
                continue

    # Fallback: stream weight tiles from HBM layer-by-layer (no residency requirement).
    return _streamed_mlp(x, padded_params, out_features, out_dtype, vmem_limit)


# --------------------------------------------------------------------------------------
# Init matching torch.nn.Linear defaults (uniform +-1/sqrt(fan_in)), torch-style layout.
# --------------------------------------------------------------------------------------
def init_mlp_params(key, in_size, h_sizes, dtype=jnp.float32):
    params = []
    dims = [in_size] + list(h_sizes)
    for i in range(len(h_sizes)):
        fan_in, fan_out = dims[i], dims[i + 1]
        key, kw, kb = jax.random.split(key, 3)
        bound = 1.0 / math.sqrt(fan_in)
        w = jax.random.uniform(kw, (fan_out, fan_in), dtype, minval=-bound, maxval=bound)
        b = jax.random.uniform(kb, (fan_out,), dtype, minval=-bound, maxval=bound)
        params.append((w, b))
    return params


def mlp_forward(x, params, *, compute_dtype=None, force_streaming=False, tile_b=None):
    """Matches MLP.forward: (Linear+ReLU) x (len(h_sizes)-1), then final Linear."""
    padded = prepare_params(params, compute_dtype=compute_dtype)
    out_features = params[-1][0].shape[0]
    return fused_mlp(x, padded, out_features, tile_b=tile_b, force_streaming=force_streaming)


def mlp_reference(x, params):
    n = len(params)
    for i, (w, b) in enumerate(params):
        x = x @ w.T + b.reshape(1, -1)
        if i < n - 1:
            x = jnp.maximum(x, 0.0)
    return x


if __name__ == "__main__":
    key = jax.random.PRNGKey(0)
    batch = 8
    in_size = 32
    h_sizes = [64, 48, 16]   # two hidden (Linear+ReLU) layers + final Linear

    kx, kp = jax.random.split(key)
    x = jax.random.normal(kx, (batch, in_size), jnp.float32)
    params = init_mlp_params(kp, in_size, h_sizes)
    ref = mlp_reference(x, params)

    # 1) Fused, f32 operands (exact semantics of the torch module).
    out = jax.block_until_ready(mlp_forward(x, params))
    assert out.shape == (batch, h_sizes[-1]), out.shape
    assert jnp.allclose(out, ref, atol=1e-5, rtol=1e-5), "f32 fused mismatch vs reference"

    # 2) Fused, bf16 operands / f32 accumulation (fast MXU path).
    out_bf16 = jax.block_until_ready(mlp_forward(x, params, compute_dtype=jnp.bfloat16))
    assert out_bf16.shape == (batch, h_sizes[-1]), out_bf16.shape
    assert jnp.allclose(out_bf16, ref, atol=1e-1, rtol=1e-1), "bf16 fused mismatch vs reference"

    # 3) Streamed-weight fallback path (exercised explicitly to validate it).
    out_stream = jax.block_until_ready(mlp_forward(x, params, force_streaming=True))
    assert jnp.allclose(out_stream, ref, atol=1e-5, rtol=1e-5), "streamed mismatch vs reference"

    print("KERNEL_OK")
</pallas_src>

<mosaic_0001>
module attributes {stable_mosaic.version = 11 : i64} {
  func.func @_fused_mlp_kernel(%arg0: i32, %arg1: memref<8x128xf32, #tpu.memory_space<vmem>>, %arg2: memref<128x128xf32, #tpu.memory_space<vmem>>, %arg3: memref<1x128xf32, #tpu.memory_space<vmem>>, %arg4: memref<128x128xf32, #tpu.memory_space<vmem>>, %arg5: memref<1x128xf32, #tpu.memory_space<vmem>>, %arg6: memref<128x128xf32, #tpu.memory_space<vmem>>, %arg7: memref<1x128xf32, #tpu.memory_space<vmem>>, %arg8: memref<8x128xf32, #tpu.memory_space<vmem>>) attributes {dimension_semantics = [#tpu.dimension_semantics<parallel>], iteration_bounds = array<i64: 1>, scalar_prefetch = 0 : i64, scratch_operands = 0 : i64, tpu.core_type = #tpu.core_type<tc>, window_params = [{transform_indices = @transform_0, window_bounds = array<i64: 8, 128>}, {pipeline_mode = #tpu.pipeline_mode<synchronous>, transform_indices = @transform_1, window_bounds = array<i64: 128, 128>}, {pipeline_mode = #tpu.pipeline_mode<synchronous>, transform_indices = @transform_2, window_bounds = array<i64: 1, 128>}, {pipeline_mode = #tpu.pipeline_mode<synchronous>, transform_indices = @transform_3, window_bounds = array<i64: 128, 128>}, {pipeline_mode = #tpu.pipeline_mode<synchronous>, transform_indices = @transform_4, window_bounds = array<i64: 1, 128>}, {pipeline_mode = #tpu.pipeline_mode<synchronous>, transform_indices = @transform_5, window_bounds = array<i64: 128, 128>}, {pipeline_mode = #tpu.pipeline_mode<synchronous>, transform_indices = @transform_6, window_bounds = array<i64: 1, 128>}, {transform_indices = @transform_7, window_bounds = array<i64: 8, 128>}]} {
    %c0 = arith.constant 0 : index
    %c0_0 = arith.constant 0 : index
    %0 = vector.load %arg1[%c0, %c0_0] : memref<8x128xf32, #tpu.memory_space<vmem>>, vector<8x128xf32>
    %c0_1 = arith.constant 0 : index
    %c0_2 = arith.constant 0 : index
    %1 = vector.load %arg2[%c0_1, %c0_2] : memref<128x128xf32, #tpu.memory_space<vmem>>, vector<128x128xf32>
    %c0_3 = arith.constant 0 : index
    %c0_4 = arith.constant 0 : index
    %2 = vector.load %arg3[%c0_3, %c0_4] : memref<1x128xf32, #tpu.memory_space<vmem>>, vector<1x128xf32>
    %cst = arith.constant dense<0.000000e+00> : vector<8x128xf32>
    %3 = tpu.matmul %0, %1, %cst {dimension_numbers = #tpu.dot_dimension_numbers<[1], [0], [0], [1], [0, 0, 1, 1], [], []>} : vector<8x128xf32>, vector<128x128xf32>, vector<8x128xf32> -> vector<8x128xf32>
    %4 = vector.broadcast %2 : vector<1x128xf32> to vector<8x128xf32>
    %5 = arith.addf %3, %4 : vector<8x128xf32>
    %cst_5 = arith.constant 0.000000e+00 : f32
    %6 = vector.broadcast %cst_5 : f32 to vector<8x128xf32>
    %7 = arith.maximumf %5, %6 : vector<8x128xf32>
    %c0_6 = arith.constant 0 : index
    %c0_7 = arith.constant 0 : index
    %8 = vector.load %arg4[%c0_6, %c0_7] : memref<128x128xf32, #tpu.memory_space<vmem>>, vector<128x128xf32>
    %c0_8 = arith.constant 0 : index
    %c0_9 = arith.constant 0 : index
    %9 = vector.load %arg5[%c0_8, %c0_9] : memref<1x128xf32, #tpu.memory_space<vmem>>, vector<1x128xf32>
    %cst_10 = arith.constant dense<0.000000e+00> : vector<8x128xf32>
    %10 = tpu.matmul %7, %8, %cst_10 {dimension_numbers = #tpu.dot_dimension_numbers<[1], [0], [0], [1], [0, 0, 1, 1], [], []>} : vector<8x128xf32>, vector<128x128xf32>, vector<8x128xf32> -> vector<8x128xf32>
    %11 = vector.broadcast %9 : vector<1x128xf32> to vector<8x128xf32>
    %12 = arith.addf %10, %11 : vector<8x128xf32>
    %cst_11 = arith.constant 0.000000e+00 : f32
    %13 = vector.broadcast %cst_11 : f32 to vector<8x128xf32>
    %14 = arith.maximumf %12, %13 : vector<8x128xf32>
    %c0_12 = arith.constant 0 : index
    %c0_13 = arith.constant 0 : index
    %15 = vector.load %arg6[%c0_12, %c0_13] : memref<128x128xf32, #tpu.memory_space<vmem>>, vector<128x128xf32>
    %c0_14 = arith.constant 0 : index
    %c0_15 = arith.constant 0 : index
    %16 = vector.load %arg7[%c0_14, %c0_15] : memref<1x128xf32, #tpu.memory_space<vmem>>, vector<1x128xf32>
    %cst_16 = arith.constant dense<0.000000e+00> : vector<8x128xf32>
    %17 = tpu.matmul %14, %15, %cst_16 {dimension_numbers = #tpu.dot_dimension_numbers<[1], [0], [0], [1], [0, 0, 1, 1], [], []>} : vector<8x128xf32>, vector<128x128xf32>, vector<8x128xf32> -> vector<8x128xf32>
    %18 = vector.broadcast %16 : vector<1x128xf32> to vector<8x128xf32>
    %19 = arith.addf %17, %18 : vector<8x128xf32>
    %c0_17 = arith.constant 0 : index
    %c0_18 = arith.constant 0 : index
    %20 = vector.load %arg8[%c0_17, %c0_18] : memref<8x128xf32, #tpu.memory_space<vmem>>, vector<8x128xf32>
    tpu.vector_store %arg8[%c0_17, %c0_18], %19 {strides = array<i32>} : memref<8x128xf32, #tpu.memory_space<vmem>>, vector<8x128xf32>,
    return
  }
  func.func @transform_0(%arg0: i32) -> (i32, i32) {
    %c0_i32 = arith.constant 0 : i32
    %c0_i32_0 = arith.constant 0 : i32
    return %arg0, %c0_i32 : i32, i32
  }
  func.func @transform_1(%arg0: i32) -> (i32, i32) {
    %c0_i32 = arith.constant 0 : i32
    %c0_i32_0 = arith.constant 0 : i32
    %c0_i32_1 = arith.constant 0 : i32
    return %c0_i32, %c0_i32_0 : i32, i32
  }
  func.func @transform_2(%arg0: i32) -> (i32, i32) {
    %c0_i32 = arith.constant 0 : i32
    %c0_i32_0 = arith.constant 0 : i32
    %c0_i32_1 = arith.constant 0 : i32
    return %c0_i32, %c0_i32_0 : i32, i32
  }
  func.func @transform_3(%arg0: i32) -> (i32, i32) {
    %c0_i32 = arith.constant 0 : i32
    %c0_i32_0 = arith.constant 0 : i32
    %c0_i32_1 = arith.constant 0 : i32
    return %c0_i32, %c0_i32_0 : i32, i32
  }
  func.func @transform_4(%arg0: i32) -> (i32, i32) {
    %c0_i32 = arith.constant 0 : i32
    %c0_i32_0 = arith.constant 0 : i32
    %c0_i32_1 = arith.constant 0 : i32
    return %c0_i32, %c0_i32_0 : i32, i32
  }
  func.func @transform_5(%arg0: i32) -> (i32, i32) {
    %c0_i32 = arith.constant 0 : i32
    %c0_i32_0 = arith.constant 0 : i32
    %c0_i32_1 = arith.constant 0 : i32
    return %c0_i32, %c0_i32_0 : i32, i32
  }
  func.func @transform_6(%arg0: i32) -> (i32, i32) {
    %c0_i32 = arith.constant 0 : i32
    %c0_i32_0 = arith.constant 0 : i32
    %c0_i32_1 = arith.constant 0 : i32
    return %c0_i32, %c0_i32_0 : i32, i32
  }
  func.func @transform_7(%arg0: i32) -> (i32, i32) {
    %c0_i32 = arith.constant 0 : i32
    %c0_i32_0 = arith.constant 0 : i32
    return %arg0, %c0_i32 : i32, i32
  }
}

module attributes {stable_mosaic.version = 11 : i64} {
  func.func @_fused_mlp_kernel(%arg0: i32, %arg1: memref<8x128xf32, #tpu.memory_space<vmem>>, %arg2: memref<128x128xf32, #tpu.memory_space<vmem>>, %arg3: memref<1x128xf32, #tpu.memory_space<vmem>>, %arg4: memref<128x128xf32, #tpu.memory_space<vmem>>, %arg5: memref<1x128xf32, #tpu.memory_space<vmem>>, %arg6: memref<128x128xf32, #tpu.memory_space<vmem>>, %arg7: memref<1x128xf32, #tpu.memory_space<vmem>>, %arg8: memref<8x128xf32, #tpu.memory_space<vmem>>) attributes {dimension_semantics = [#tpu.dimension_semantics<parallel>], iteration_bounds = array<i64: 1>, scalar_prefetch = 0 : i64, scratch_operands = 0 : i64, tpu.core_type = #tpu.core_type<tc>, window_params = [{transform_indices = @transform_0, window_bounds = array<i64: 8, 128>}, {pipeline_mode = #tpu.pipeline_mode<synchronous>, transform_indices = @transform_1, window_bounds = array<i64: 128, 128>}, {pipeline_mode = #tpu.pipeline_mode<synchronous>, transform_indices = @transform_2, window_bounds = array<i64: 1, 128>}, {pipeline_mode = #tpu.pipeline_mode<synchronous>, transform_indices = @transform_3, window_bounds = array<i64: 128, 128>}, {pipeline_mode = #tpu.pipeline_mode<synchronous>, transform_indices = @transform_4, window_bounds = array<i64: 1, 128>}, {pipeline_mode = #tpu.pipeline_mode<synchronous>, transform_indices = @transform_5, window_bounds = array<i64: 128, 128>}, {pipeline_mode = #tpu.pipeline_mode<synchronous>, transform_indices = @transform_6, window_bounds = array<i64: 1, 128>}, {transform_indices = @transform_7, window_bounds = array<i64: 8, 128>}]} {
    %c0 = arith.constant 0 : index
    %c0_0 = arith.constant 0 : index
    %0 = vector.load %arg1[%c0, %c0_0] : memref<8x128xf32, #tpu.memory_space<vmem>>, vector<8x128xf32>
    %c0_1 = arith.constant 0 : index
    %c0_2 = arith.constant 0 : index
    %1 = vector.load %arg2[%c0_1, %c0_2] : memref<128x128xf32, #tpu.memory_space<vmem>>, vector<128x128xf32>
    %c0_3 = arith.constant 0 : index
    %c0_4 = arith.constant 0 : index
    %2 = vector.load %arg3[%c0_3, %c0_4] : memref<1x128xf32, #tpu.memory_space<vmem>>, vector<1x128xf32>
    %cst = arith.constant dense<0.000000e+00> : vector<8x128xf32>
    %3 = tpu.matmul %0, %1, %cst {dimension_numbers = #tpu.dot_dimension_numbers<[1], [0], [0], [1], [0, 0, 1, 1], [], []>} : vector<8x128xf32>, vector<128x128xf32>, vector<8x128xf32> -> vector<8x128xf32>
    %4 = vector.broadcast %2 : vector<1x128xf32> to vector<8x128xf32>
    %5 = arith.addf %3, %4 : vector<8x128xf32>
    %cst_5 = arith.constant 0.000000e+00 : f32
    %6 = vector.broadcast %cst_5 : f32 to vector<8x128xf32>
    %7 = arith.maximumf %5, %6 : vector<8x128xf32>
    %c0_6 = arith.constant 0 : index
    %c0_7 = arith.constant 0 : index
    %8 = vector.load %arg4[%c0_6, %c0_7] : memref<128x128xf32, #tpu.memory_space<vmem>>, vector<128x128xf32>
    %c0_8 = arith.constant 0 : index
    %c0_9 = arith.constant 0 : index
    %9 = vector.load %arg5[%c0_8, %c0_9] : memref<1x128xf32, #tpu.memory_space<vmem>>, vector<1x128xf32>
    %cst_10 = arith.constant dense<0.000000e+00> : vector<8x128xf32>
    %10 = tpu.matmul %7, %8, %cst_10 {dimension_numbers = #tpu.dot_dimension_numbers<[1], [0], [0], [1], [0, 0, 1, 1], [], []>} : vector<8x128xf32>, vector<128x128xf32>, vector<8x128xf32> -> vector<8x128xf32>
    %11 = vector.broadcast %9 : vector<1x128xf32> to vector<8x128xf32>
    %12 = arith.addf %10, %11 : vector<8x128xf32>
    %cst_11 = arith.constant 0.000000e+00 : f32
    %13 = vector.broadcast %cst_11 : f32 to vector<8x128xf32>
    %14 = arith.maximumf %12, %13 : vector<8x128xf32>
    %c0_12 = arith.constant 0 : index
    %c0_13 = arith.constant 0 : index
    %15 = vector.load %arg6[%c0_12, %c0_13] : memref<128x128xf32, #tpu.memory_space<vmem>>, vector<128x128xf32>
    %c0_14 = arith.constant 0 : index
    %c0_15 = arith.constant 0 : index
    %16 = vector.load %arg7[%c0_14, %c0_15] : memref<1x128xf32, #tpu.memory_space<vmem>>, vector<1x128xf32>
    %cst_16 = arith.constant dense<0.000000e+00> : vector<8x128xf32>
    %17 = tpu.matmul %14, %15, %cst_16 {dimension_numbers = #tpu.dot_dimension_numbers<[1], [0], [0], [1], [0, 0, 1, 1], [], []>} : vector<8x128xf32>, vector<128x128xf32>, vector<8x128xf32> -> vector<8x128xf32>
    %18 = vector.broadcast %16 : vector<1x128xf32> to vector<8x128xf32>
    %19 = arith.addf %17, %18 : vector<8x128xf32>
    %c0_17 = arith.constant 0 : index
    %c0_18 = arith.constant 0 : index
    %20 = vector.load %arg8[%c0_17, %c0_18] : memref<8x128xf32, #tpu.memory_space<vmem>>, vector<8x128xf32>
    tpu.vector_store %arg8[%c0_17, %c0_18], %19 {strides = array<i32>} : memref<8x128xf32, #tpu.memory_space<vmem>>, vector<8x128xf32>,
    return
  }
  func.func @transform_0(%arg0: i32) -> (i32, i32) {
    %c0_i32 = arith.constant 0 : i32
    %c0_i32_0 = arith.constant 0 : i32
    return %arg0, %c0_i32 : i32, i32
  }
  func.func @transform_1(%arg0: i32) -> (i32, i32) {
    %c0_i32 = arith.constant 0 : i32
    %c0_i32_0 = arith.constant 0 : i32
    %c0_i32_1 = arith.constant 0 : i32
    return %c0_i32, %c0_i32_0 : i32, i32
  }
  func.func @transform_2(%arg0: i32) -> (i32, i32) {
    %c0_i32 = arith.constant 0 : i32
    %c0_i32_0 = arith.constant 0 : i32
    %c0_i32_1 = arith.constant 0 : i32
    return %c0_i32, %c0_i32_0 : i32, i32
  }
  func.func @transform_3(%arg0: i32) -> (i32, i32) {
    %c0_i32 = arith.constant 0 : i32
    %c0_i32_0 = arith.constant 0 : i32
    %c0_i32_1 = arith.constant 0 : i32
    return %c0_i32, %c0_i32_0 : i32, i32
  }
  func.func @transform_4(%arg0: i32) -> (i32, i32) {
    %c0_i32 = arith.constant 0 : i32
    %c0_i32_0 = arith.constant 0 : i32
    %c0_i32_1 = arith.constant 0 : i32
    return %c0_i32, %c0_i32_0 : i32, i32
  }
  func.func @transform_5(%arg0: i32) -> (i32, i32) {
    %c0_i32 = arith.constant 0 : i32
    %c0_i32_0 = arith.constant 0 : i32
    %c0_i32_1 = arith.constant 0 : i32
    return %c0_i32, %c0_i32_0 : i32, i32
  }
  func.func @transform_6(%arg0: i32) -> (i32, i32) {
    %c0_i32 = arith.constant 0 : i32
    %c0_i32_0 = arith.constant 0 : i32
    %c0_i32_1 = arith.constant 0 : i32
    return %c0_i32, %c0_i32_0 : i32, i32
  }
  func.func @transform_7(%arg0: i32) -> (i32, i32) {
    %c0_i32 = arith.constant 0 : i32
    %c0_i32_0 = arith.constant 0 : i32
    return %arg0, %c0_i32 : i32, i32
  }
}

module attributes {stable_mosaic.version = 11 : i64} {
  func.func @_linear_kernel(%arg0: i32, %arg1: i32, %arg2: i32, %arg3: memref<8x128xf32, #tpu.memory_space<vmem>>, %arg4: memref<128x128xf32, #tpu.memory_space<vmem>>, %arg5: memref<1x128xf32, #tpu.memory_space<vmem>>, %arg6: memref<8x128xf32, #tpu.memory_space<vmem>>, %arg7: memref<8x128xf32, #tpu.memory_space<vmem>>) attributes {dimension_semantics = [#tpu.dimension_semantics<parallel>, #tpu.dimension_semantics<parallel>, #tpu.dimension_semantics<arbitrary>], iteration_bounds = array<i64: 1, 1, 1>, scalar_prefetch = 0 : i64, scratch_operands = 1 : i64, tpu.core_type = #tpu.core_type<tc>, window_params = [{transform_indices = @transform_0, window_bounds = array<i64: 8, 128>}, {transform_indices = @transform_1, window_bounds = array<i64: 128, 128>}, {transform_indices = @transform_2, window_bounds = array<i64: 1, 128>}, {transform_indices = @transform_3, window_bounds = array<i64: 8, 128>}]} {
    %c0_i32 = arith.constant 0 : i32
    %0 = arith.cmpi eq, %arg2, %c0_i32 : i32
    %1 = arith.extui %0 : i1 to i32
    %c0_i32_0 = arith.constant 0 : i32
    %2 = arith.cmpi ne, %1, %c0_i32_0 : i32
    scf.if %2 {
      %cst_10 = arith.constant 0.000000e+00 : f32
      %12 = vector.broadcast %cst_10 : f32 to vector<8x128xf32>
      %c0_11 = arith.constant 0 : index
      %c0_12 = arith.constant 0 : index
      %13 = vector.load %arg7[%c0_11, %c0_12] : memref<8x128xf32, #tpu.memory_space<vmem>>, vector<8x128xf32>
      tpu.vector_store %arg7[%c0_11, %c0_12], %12 {strides = array<i32>} : memref<8x128xf32, #tpu.memory_space<vmem>>, vector<8x128xf32>,
    } else {
    }
    %c0 = arith.constant 0 : index
    %c0_1 = arith.constant 0 : index
    %3 = vector.load %arg7[%c0, %c0_1] : memref<8x128xf32, #tpu.memory_space<vmem>>, vector<8x128xf32>
    %c0_2 = arith.constant 0 : index
    %c0_3 = arith.constant 0 : index
    %4 = vector.load %arg3[%c0_2, %c0_3] : memref<8x128xf32, #tpu.memory_space<vmem>>, vector<8x128xf32>
    %c0_4 = arith.constant 0 : index
    %c0_5 = arith.constant 0 : index
    %5 = vector.load %arg4[%c0_4, %c0_5] : memref<128x128xf32, #tpu.memory_space<vmem>>, vector<128x128xf32>
    %cst = arith.constant dense<0.000000e+00> : vector<8x128xf32>
    %6 = tpu.matmul %4, %5, %cst {dimension_numbers = #tpu.dot_dimension_numbers<[1], [0], [0], [1], [0, 0, 1, 1], [], []>} : vector<8x128xf32>, vector<128x128xf32>, vector<8x128xf32> -> vector<8x128xf32>
    %7 = arith.addf %3, %6 : vector<8x128xf32>
    %c0_6 = arith.constant 0 : index
    %c0_7 = arith.constant 0 : index
    %8 = vector.load %arg7[%c0_6, %c0_7] : memref<8x128xf32, #tpu.memory_space<vmem>>, vector<8x128xf32>
    tpu.vector_store %arg7[%c0_6, %c0_7], %7 {strides = array<i32>} : memref<8x128xf32, #tpu.memory_space<vmem>>, vector<8x128xf32>,
    %c0_i32_8 = arith.constant 0 : i32
    %9 = arith.cmpi eq, %arg2, %c0_i32_8 : i32
    %10 = arith.extui %9 : i1 to i32
    %c0_i32_9 = arith.constant 0 : i32
    %11 = arith.cmpi ne, %10, %c0_i32_9 : i32
    scf.if %11 {
      %c0_10 = arith.constant 0 : index
      %c0_11 = arith.constant 0 : index
      %12 = vector.load %arg7[%c0_10, %c0_11] : memref<8x128xf32, #tpu.memory_space<vmem>>, vector<8x128xf32>
      %c0_12 = arith.constant 0 : index
      %c0_13 = arith.constant 0 : index
      %13 = vector.load %arg5[%c0_12, %c0_13] : memref<1x128xf32, #tpu.memory_space<vmem>>, vector<1x128xf32>
      %14 = vector.broadcast %13 : vector<1x128xf32> to vector<8x128xf32>
      %15 = arith.addf %12, %14 : vector<8x128xf32>
      %cst_14 = arith.constant 0.000000e+00 : f32
      %16 = vector.broadcast %cst_14 : f32 to vector<8x128xf32>
      %17 = arith.maximumf %15, %16 : vector<8x128xf32>
      %c0_15 = arith.constant 0 : index
      %c0_16 = arith.constant 0 : index
      %18 = vector.load %arg6[%c0_15, %c0_16] : memref<8x128xf32, #tpu.memory_space<vmem>>, vector<8x128xf32>
      tpu.vector_store %arg6[%c0_15, %c0_16], %17 {strides = array<i32>} : memref<8x128xf32, #tpu.memory_space<vmem>>, vector<8x128xf32>,
    } else {
    }
    return
  }
  func.func @transform_0(%arg0: i32, %arg1: i32, %arg2: i32) -> (i32, i32) {
    %c0_i32 = arith.constant 0 : i32
    return %arg0, %arg2 : i32, i32
  }
  func.func @transform_1(%arg0: i32, %arg1: i32, %arg2: i32) -> (i32, i32) {
    %c0_i32 = arith.constant 0 : i32
    return %arg2, %arg1 : i32, i32
  }
  func.func @transform_2(%arg0: i32, %arg1: i32, %arg2: i32) -> (i32, i32) {
    %c0_i32 = arith.constant 0 : i32
    %c0_i32_0 = arith.constant 0 : i32
    return %c0_i32, %arg1 : i32, i32
  }
  func.func @transform_3(%arg0: i32, %arg1: i32, %arg2: i32) -> (i32, i32) {
    %c0_i32 = arith.constant 0 : i32
    return %arg0, %arg1 : i32, i32
  }
}

</mosaic_0001>

<llo_original>
// kernel: tpu_custom_call.1
$region0: #{tpu_custom_call.1}
  #allocation0 [shape = 'u32[]', space=smem, size = 0x4, offset = 0x4, fixed_abs, tag = 'smem constant byte address 0x4 - core index']
  #allocation1 [shape = 'u32[144,128]{1,0:T(1,128)}', space=vmem, size = 0x12000, scoped, tag = 'internal scratch']
  %s0 = inlined_call_operand.hbm [shape: f32[8,128], index: 0, kind: input, shape index: {}]
  %s1 = inlined_call_operand.hbm [shape: f32[128,128], index: 1, kind: input, shape index: {}]
  %s2 = inlined_call_operand.vmem [shape: f32[1,128], index: 2, kind: input, shape index: {}]
  %s3 = inlined_call_operand.hbm [shape: f32[128,128], index: 3, kind: input, shape index: {}]
  %s4 = inlined_call_operand.vmem [shape: f32[1,128], index: 4, kind: input, shape index: {}]
  %s5 = inlined_call_operand.hbm [shape: f32[128,128], index: 5, kind: input, shape index: {}]
  %s6 = inlined_call_operand.vmem [shape: f32[1,128], index: 6, kind: input, shape index: {}]
  %s7 = inlined_call_operand.hbm [shape: f32[8,128], index: 7, kind: output, shape index: {}]
  %s8 = sld [smem:[#allocation0]]
  $region54: #{tpu_custom_call.1} parent=0
    _
  %s10 = ssub.s32 1, %s8
  %s11 = scalar_select 0, %s10, %s8
  $region1: #{tpu_custom_call.1} parent=0
    #allocation2 [shape = 'u8[4096]{0}', space=vmem, size = 0x1000, scoped, tag = 'input window, operand 0, single buffered']
    #allocation3 [shape = 's32[1]{0}', space=sflag, size = 0x4, scoped, tag = 'scoped memory for tpu_custom_call.1']
    #allocation4 [shape = 's32[1]{0}', space=sflag, size = 0x4, scoped, tag = 'scoped memory for tpu_custom_call.1']
    #allocation5 [shape = 'u8[65536]{0}', space=vmem, size = 0x10000, scoped, tag = 'input window, operand 1, single buffered']
    #allocation6 [shape = 's32[1]{0}', space=sflag, size = 0x4, scoped, tag = 'scoped memory for tpu_custom_call.1']
    #allocation7 [shape = 'u8[65536]{0}', space=vmem, size = 0x10000, scoped, tag = 'input window, operand 3, single buffered']
    #allocation8 [shape = 'u8[65536]{0}', space=vmem, size = 0x10000, scoped, tag = 'input window, operand 5, single buffered']
    #allocation9 [shape = 's32[1]{0}', space=sflag, size = 0x4, scoped, tag = 'scoped memory for tpu_custom_call.1']
    #allocation10 [shape = 'u8[4096]{0}', space=vmem, size = 0x1000, scoped, tag = 'output window, operand 0, single buffered']
    %12 = vsyncpa [#allocation3], 0
    %13 = vsyncpa [#allocation6], 0
    %14 = vsyncpa [#allocation9], 0
    %15 = vsyncpa [#allocation4], 0
    // Predicated region
    $region2: #{tpu_custom_call.1} parent=1 // pred_check
      _
    $region3: #{tpu_custom_call.1} parent=1 // pred_check_branch
      %17 = sbr.rel (0) target = $region5
    $region4: #{tpu_custom_call.1} parent=1 // pred_region
      %s19 = ssub.s32 128, 128
      %20 = vsyncadd [#allocation3], %s19
      %s22 = sshll.u32 [#allocation2], 4
      %s23 = int_to_ptr.vmem [resolvable:$true] %s22
      %25 = dma.hbm_to_vmem [thread:$0]  %s0, 128, %s23, [#allocation3]
    $region5: #{tpu_custom_call.1} parent=1 // pred_fallthru
      _
    // Predicated region
    $region6: #{tpu_custom_call.1} parent=1 // pred_check
      _
    $region7: #{tpu_custom_call.1} parent=1 // pred_check_branch
      %27 = sbr.rel (0) target = $region9
    $region8: #{tpu_custom_call.1} parent=1 // pred_region
      %s29 = ssub.s32 2048, 2048
      %30 = vsyncadd [#allocation6], %s29
      %s31 = sshll.u32 [#allocation5], 4
      %s32 = int_to_ptr.vmem [resolvable:$true] %s31
      %37 = dma.hbm_to_vmem [thread:$0]  %s1, 2048, %s32, [#allocation6], 128, 128, 8
    $region9: #{tpu_custom_call.1} parent=1 // pred_fallthru
      _
    // Predicated region
    $region10: #{tpu_custom_call.1} parent=1 // pred_check
      _
    $region11: #{tpu_custom_call.1} parent=1 // pred_check_branch
      %39 = sbr.rel (0) target = $region13
    $region12: #{tpu_custom_call.1} parent=1 // pred_region
      _
    $region13: #{tpu_custom_call.1} parent=1 // pred_fallthru
      _
    // Predicated region
    $region14: #{tpu_custom_call.1} parent=1 // pred_check
      _
    $region15: #{tpu_custom_call.1} parent=1 // pred_check_branch
      %41 = sbr.rel (0) target = $region17
    $region16: #{tpu_custom_call.1} parent=1 // pred_region
      %s43 = ssub.s32 2048, 2048
      %44 = vsyncadd [#allocation6], %s43
      %s45 = sshll.u32 [#allocation7], 4
      %s46 = int_to_ptr.vmem [resolvable:$true] %s45
      %51 = dma.hbm_to_vmem [thread:$0]  %s3, 2048, %s46, [#allocation6], 128, 128, 8
    $region17: #{tpu_custom_call.1} parent=1 // pred_fallthru
      _
    // Predicated region
    $region18: #{tpu_custom_call.1} parent=1 // pred_check
      _
    $region19: #{tpu_custom_call.1} parent=1 // pred_check_branch
      %53 = sbr.rel (0) target = $region21
    $region20: #{tpu_custom_call.1} parent=1 // pred_region
      _
    $region21: #{tpu_custom_call.1} parent=1 // pred_fallthru
      _
    // Predicated region
    $region22: #{tpu_custom_call.1} parent=1 // pred_check
      _
    $region23: #{tpu_custom_call.1} parent=1 // pred_check_branch
      %55 = sbr.rel (0) target = $region25
    $region24: #{tpu_custom_call.1} parent=1 // pred_region
      %s57 = ssub.s32 2048, 2048
      %58 = vsyncadd [#allocation9], %s57
      %s59 = sshll.u32 [#allocation8], 4
      %s60 = int_to_ptr.vmem [resolvable:$true] %s59
      %65 = dma.hbm_to_vmem [thread:$0]  %s5, 2048, %s60, [#allocation9], 128, 128, 8
    $region25: #{tpu_custom_call.1} parent=1 // pred_fallthru
      _
    // Predicated region
    $region26: #{tpu_custom_call.1} parent=1 // pred_check
      _
    $region27: #{tpu_custom_call.1} parent=1 // pred_check_branch
      %67 = sbr.rel (0) target = $region29
    $region28: #{tpu_custom_call.1} parent=1 // pred_region
      _
    $region29: #{tpu_custom_call.1} parent=1 // pred_fallthru
      _
    // Predicated region
    $region30: #{tpu_custom_call.1} parent=1 // pred_check
      _
    $region31: #{tpu_custom_call.1} parent=1 // pred_check_branch
      %69 = sbr.rel (0) target = $region33
    $region32: #{tpu_custom_call.1} parent=1 // pred_region
      %70 = dma.done [#allocation3], 128
    $region33: #{tpu_custom_call.1} parent=1 // pred_fallthru
      _
    // Predicated region
    $region34: #{tpu_custom_call.1} parent=1 // pred_check
      _
    $region35: #{tpu_custom_call.1} parent=1 // pred_check_branch
      %72 = sbr.rel (0) target = $region37
    $region36: #{tpu_custom_call.1} parent=1 // pred_region
      %73 = dma.done [#allocation6], 2048
    $region37: #{tpu_custom_call.1} parent=1 // pred_fallthru
      _
    // Predicated region
    $region38: #{tpu_custom_call.1} parent=1 // pred_check
      _
    $region39: #{tpu_custom_call.1} parent=1 // pred_check_branch
      %75 = sbr.rel (0) target = $region41
    $region40: #{tpu_custom_call.1} parent=1 // pred_region
      %76 = dma.done [#allocation6], 2048
    $region41: #{tpu_custom_call.1} parent=1 // pred_fallthru
      _
    // Predicated region
    $region42: #{tpu_custom_call.1} parent=1 // pred_check
      _
    $region43: #{tpu_custom_call.1} parent=1 // pred_check_branch
      %78 = sbr.rel (0) target = $region45
    $region44: #{tpu_custom_call.1} parent=1 // pred_region
      %79 = dma.done [#allocation9], 2048
    $region45: #{tpu_custom_call.1} parent=1 // pred_fallthru
      _
    %v80 = vld [vmem:[#allocation2] sm:$0xff]
    %v81 = vld [vmem:[#allocation5] sm:$0xff]
    %v82 = vld [vmem:[#allocation5 + $0x8] sm:$0xff]
    %v83 = vld [vmem:[#allocation5 + $0x10] sm:$0xff]
    %v84 = vld [vmem:[#allocation5 + $0x18] sm:$0xff]
    %v85 = vld [vmem:[#allocation5 + $0x20] sm:$0xff]
    %v86 = vld [vmem:[#allocation5 + $0x28] sm:$0xff]
    %v87 = vld [vmem:[#allocation5 + $0x30] sm:$0xff]
    %v88 = vld [vmem:[#allocation5 + $0x38] sm:$0xff]
    %v89 = vld [vmem:[#allocation5 + $0x40] sm:$0xff]
    %v90 = vld [vmem:[#allocation5 + $0x48] sm:$0xff]
    %v91 = vld [vmem:[#allocation5 + $0x50] sm:$0xff]
    %v92 = vld [vmem:[#allocation5 + $0x58] sm:$0xff]
    %v93 = vld [vmem:[#allocation5 + $0x60] sm:$0xff]
    %v94 = vld [vmem:[#allocation5 + $0x68] sm:$0xff]
    %v95 = vld [vmem:[#allocation5 + $0x70] sm:$0xff]
    %v96 = vld [vmem:[#allocation5 + $0x78] sm:$0xff]
    %v97 = vld [vmem:[%s2] sm:$0x1]
    %v99 = vlaneseq
    %v100 = vshrl.u32 %v99, 7
    %v101 = vsub.s32 0, %v100
    %v102 = vrot.slane %v97, %v101
    %104 = vmatprep.subr.mxu0 0.0
    %105 = vmatpush1.msra.mxu0 %v96
    %106 = vmatprep.subr.mxu0 0.0
    %107 = vmatpush1.msra.mxu0 %v95
    %108 = vmatprep.subr.mxu0 0.0
    %109 = vmatpush1.msra.mxu0 %v94
    %110 = vmatprep.subr.mxu0 0.0
    %111 = vmatpush1.msra.mxu0 %v93
    %112 = vmatprep.subr.mxu0 0.0
    %113 = vmatpush1.msra.mxu0 %v92
    %114 = vmatprep.subr.mxu0 0.0
    %115 = vmatpush1.msra.mxu0 %v91
    %116 = vmatprep.subr.mxu0 0.0
    %117 = vmatpush1.msra.mxu0 %v90
    %118 = vmatprep.subr.mxu0 0.0
    %119 = vmatpush1.msra.mxu0 %v89
    %120 = vmatprep.subr.mxu0 0.0
    %121 = vmatpush1.msra.mxu0 %v88
    %122 = vmatprep.subr.mxu0 0.0
    %123 = vmatpush1.msra.mxu0 %v87
    %124 = vmatprep.subr.mxu0 0.0
    %125 = vmatpush1.msra.mxu0 %v86
    %126 = vmatprep.subr.mxu0 0.0
    %127 = vmatpush1.msra.mxu0 %v85
    %128 = vmatprep.subr.mxu0 0.0
    %129 = vmatpush1.msra.mxu0 %v84
    %130 = vmatprep.subr.mxu0 0.0
    %131 = vmatpush1.msra.mxu0 %v83
    %132 = vmatprep.subr.mxu0 0.0
    %133 = vmatpush1.msra.mxu0 %v82
    %134 = vmatprep.subr.mxu0 0.0
    %135 = vmatpush1.msra.mxu0 %v81
    %136 = vmatprep.subr.mxu0 0.0
    %137 = vmatpush2.msra.mxu0 0.0
    %138 = vmatprep.subr.mxu0 0.0
    %139 = vmatpush2.msra.mxu0 0.0
    %140 = vmatprep.subr.mxu0 0.0
    %141 = vmatpush2.msra.mxu0 0.0
    %142 = vmatprep.subr.mxu0 0.0
    %143 = vmatpush2.msra.mxu0 0.0
    %144 = vmatprep.subr.mxu0 0.0
    %145 = vmatpush2.msra.mxu0 0.0
    %146 = vmatprep.subr.mxu0 0.0
    %147 = vmatpush2.msra.mxu0 0.0
    %148 = vmatprep.subr.mxu0 0.0
    %149 = vmatpush2.msra.mxu0 0.0
    %150 = vmatprep.subr.mxu0 0.0
    %151 = vmatpush2.msra.mxu0 0.0
    %152 = vmatprep.subr.mxu0 0.0
    %153 = vmatpush2.msra.mxu0 0.0
    %154 = vmatprep.subr.mxu0 0.0
    %155 = vmatpush2.msra.mxu0 0.0
    %156 = vmatprep.subr.mxu0 0.0
    %157 = vmatpush2.msra.mxu0 0.0
    %158 = vmatprep.subr.mxu0 0.0
    %159 = vmatpush2.msra.mxu0 0.0
    %160 = vmatprep.subr.mxu0 0.0
    %161 = vmatpush2.msra.mxu0 0.0
    %162 = vmatprep.subr.mxu0 0.0
    %163 = vmatpush2.msra.mxu0 0.0
    %164 = vmatprep.subr.mxu0 0.0
    %165 = vmatpush2.msra.mxu0 0.0
    %166 = vmatprep.subr.mxu0 0.0
    %167 = vmatpush2.msra.mxu0 0.0
    %168 = vmatprep.mubr.f32.mxu0 0.0
    %169 = vmatmul.mubr.f32.gmra.mxu0 %v80
    %v170 = vpop.f32.mrf.mxu0
    %v171 = vadd.f32 %v102, %v170
    %v172 = vpop.f32.mrf.mxu0
    %173 = vdwg.mxu0
    %v174 = vmax.f32 %v171, 0.0
    %v175 = vld [vmem:[#allocation7] sm:$0xff]
    %v176 = vld [vmem:[#allocation7 + $0x8] sm:$0xff]
    %v177 = vld [vmem:[#allocation7 + $0x10] sm:$0xff]
    %v178 = vld [vmem:[#allocation7 + $0x18] sm:$0xff]
    %v179 = vld [vmem:[#allocation7 + $0x20] sm:$0xff]
    %v180 = vld [vmem:[#allocation7 + $0x28] sm:$0xff]
    %v181 = vld [vmem:[#allocation7 + $0x30] sm:$0xff]
    %v182 = vld [vmem:[#allocation7 + $0x38] sm:$0xff]
    %v183 = vld [vmem:[#allocation7 + $0x40] sm:$0xff]
    %v184 = vld [vmem:[#allocation7 + $0x48] sm:$0xff]
    %v185 = vld [vmem:[#allocation7 + $0x50] sm:$0xff]
    %v186 = vld [vmem:[#allocation7 + $0x58] sm:$0xff]
    %v187 = vld [vmem:[#allocation7 + $0x60] sm:$0xff]
    %v188 = vld [vmem:[#allocation7 + $0x68] sm:$0xff]
    %v189 = vld [vmem:[#allocation7 + $0x70] sm:$0xff]
    %v190 = vld [vmem:[#allocation7 + $0x78] sm:$0xff]
    %v191 = vld [vmem:[%s4] sm:$0x1]
    %v193 = vlaneseq
    %v194 = vshrl.u32 %v193, 7
    %v195 = vsub.s32 0, %v194
    %v196 = vrot.slane %v191, %v195
    %198 = vmatprep.subr.mxu0 0.0
    %199 = vmatpush1.msra.mxu0 %v190
    %200 = vmatprep.subr.mxu0 0.0
    %201 = vmatpush1.msra.mxu0 %v189
    %202 = vmatprep.subr.mxu0 0.0
    %203 = vmatpush1.msra.mxu0 %v188
    %204 = vmatprep.subr.mxu0 0.0
    %205 = vmatpush1.msra.mxu0 %v187
    %206 = vmatprep.subr.mxu0 0.0
    %207 = vmatpush1.msra.mxu0 %v186
    %208 = vmatprep.subr.mxu0 0.0
    %209 = vmatpush1.msra.mxu0 %v185
    %210 = vmatprep.subr.mxu0 0.0
    %211 = vmatpush1.msra.mxu0 %v184
    %212 = vmatprep.subr.mxu0 0.0
    %213 = vmatpush1.msra.mxu0 %v183
    %214 = vmatprep.subr.mxu0 0.0
    %215 = vmatpush1.msra.mxu0 %v182
    %216 = vmatprep.subr.mxu0 0.0
    %217 = vmatpush1.msra.mxu0 %v181
    %218 = vmatprep.subr.mxu0 0.0
    %219 = vmatpush1.msra.mxu0 %v180
    %220 = vmatprep.subr.mxu0 0.0
    %221 = vmatpush1.msra.mxu0 %v179
    %222 = vmatprep.subr.mxu0 0.0
    %223 = vmatpush1.msra.mxu0 %v178
    %224 = vmatprep.subr.mxu0 0.0
    %225 = vmatpush1.msra.mxu0 %v177
    %226 = vmatprep.subr.mxu0 0.0
    %227 = vmatpush1.msra.mxu0 %v176
    %228 = vmatprep.subr.mxu0 0.0
    %229 = vmatpush1.msra.mxu0 %v175
    %230 = vmatprep.subr.mxu0 0.0
    %231 = vmatpush2.msra.mxu0 0.0
    %232 = vmatprep.subr.mxu0 0.0
    %233 = vmatpush2.msra.mxu0 0.0
    %234 = vmatprep.subr.mxu0 0.0
    %235 = vmatpush2.msra.mxu0 0.0
    %236 = vmatprep.subr.mxu0 0.0
    %237 = vmatpush2.msra.mxu0 0.0
    %238 = vmatprep.subr.mxu0 0.0
    %239 = vmatpush2.msra.mxu0 0.0
    %240 = vmatprep.subr.mxu0 0.0
    %241 = vmatpush2.msra.mxu0 0.0
    %242 = vmatprep.subr.mxu0 0.0
    %243 = vmatpush2.msra.mxu0 0.0
    %244 = vmatprep.subr.mxu0 0.0
    %245 = vmatpush2.msra.mxu0 0.0
    %246 = vmatprep.subr.mxu0 0.0
    %247 = vmatpush2.msra.mxu0 0.0
    %248 = vmatprep.subr.mxu0 0.0
    %249 = vmatpush2.msra.mxu0 0.0
    %250 = vmatprep.subr.mxu0 0.0
    %251 = vmatpush2.msra.mxu0 0.0
    %252 = vmatprep.subr.mxu0 0.0
    %253 = vmatpush2.msra.mxu0 0.0
    %254 = vmatprep.subr.mxu0 0.0
    %255 = vmatpush2.msra.mxu0 0.0
    %256 = vmatprep.subr.mxu0 0.0
    %257 = vmatpush2.msra.mxu0 0.0
    %258 = vmatprep.subr.mxu0 0.0
    %259 = vmatpush2.msra.mxu0 0.0
    %260 = vmatprep.subr.mxu0 0.0
    %261 = vmatpush2.msra.mxu0 0.0
    %262 = vmatprep.mubr.f32.mxu0 0.0
    %263 = vmatmul.mubr.f32.gmra.mxu0 %v174
    %v264 = vpop.f32.mrf.mxu0
    %v265 = vadd.f32 %v196, %v264
    %v266 = vpop.f32.mrf.mxu0
    %267 = vdwg.mxu0
    %v268 = vmax.f32 %v265, 0.0
    %v269 = vld [vmem:[#allocation8] sm:$0xff]
    %v270 = vld [vmem:[#allocation8 + $0x8] sm:$0xff]
    %v271 = vld [vmem:[#allocation8 + $0x10] sm:$0xff]
    %v272 = vld [vmem:[#allocation8 + $0x18] sm:$0xff]
    %v273 = vld [vmem:[#allocation8 + $0x20] sm:$0xff]
    %v274 = vld [vmem:[#allocation8 + $0x28] sm:$0xff]
    %v275 = vld [vmem:[#allocation8 + $0x30] sm:$0xff]
    %v276 = vld [vmem:[#allocation8 + $0x38] sm:$0xff]
    %v277 = vld [vmem:[#allocation8 + $0x40] sm:$0xff]
    %v278 = vld [vmem:[#allocation8 + $0x48] sm:$0xff]
    %v279 = vld [vmem:[#allocation8 + $0x50] sm:$0xff]
    %v280 = vld [vmem:[#allocation8 + $0x58] sm:$0xff]
    %v281 = vld [vmem:[#allocation8 + $0x60] sm:$0xff]
    %v282 = vld [vmem:[#allocation8 + $0x68] sm:$0xff]
    %v283 = vld [vmem:[#allocation8 + $0x70] sm:$0xff]
    %v284 = vld [vmem:[#allocation8 + $0x78] sm:$0xff]
    %v285 = vld [vmem:[%s6] sm:$0x1]
    %v287 = vlaneseq
    %v288 = vshrl.u32 %v287, 7
    %v289 = vsub.s32 0, %v288
    %v290 = vrot.slane %v285, %v289
    %292 = vmatprep.subr.mxu0 0.0
    %293 = vmatpush1.msra.mxu0 %v284
    %294 = vmatprep.subr.mxu0 0.0
    %295 = vmatpush1.msra.mxu0 %v283
    %296 = vmatprep.subr.mxu0 0.0
    %297 = vmatpush1.msra.mxu0 %v282
    %298 = vmatprep.subr.mxu0 0.0
    %299 = vmatpush1.msra.mxu0 %v281
    %300 = vmatprep.subr.mxu0 0.0
    %301 = vmatpush1.msra.mxu0 %v280
    %302 = vmatprep.subr.mxu0 0.0
    %303 = vmatpush1.msra.mxu0 %v279
    %304 = vmatprep.subr.mxu0 0.0
    %305 = vmatpush1.msra.mxu0 %v278
    %306 = vmatprep.subr.mxu0 0.0
    %307 = vmatpush1.msra.mxu0 %v277
    %308 = vmatprep.subr.mxu0 0.0
    %309 = vmatpush1.msra.mxu0 %v276
    %310 = vmatprep.subr.mxu0 0.0
    %311 = vmatpush1.msra.mxu0 %v275
    %312 = vmatprep.subr.mxu0 0.0
    %313 = vmatpush1.msra.mxu0 %v274
    %314 = vmatprep.subr.mxu0 0.0
    %315 = vmatpush1.msra.mxu0 %v273
    %316 = vmatprep.subr.mxu0 0.0
    %317 = vmatpush1.msra.mxu0 %v272
    %318 = vmatprep.subr.mxu0 0.0
    %319 = vmatpush1.msra.mxu0 %v271
    %320 = vmatprep.subr.mxu0 0.0
    %321 = vmatpush1.msra.mxu0 %v270
    %322 = vmatprep.subr.mxu0 0.0
    %323 = vmatpush1.msra.mxu0 %v269
    %324 = vmatprep.subr.mxu0 0.0
    %325 = vmatpush2.msra.mxu0 0.0
    %326 = vmatprep.subr.mxu0 0.0
    %327 = vmatpush2.msra.mxu0 0.0
    %328 = vmatprep.subr.mxu0 0.0
    %329 = vmatpush2.msra.mxu0 0.0
    %330 = vmatprep.subr.mxu0 0.0
    %331 = vmatpush2.msra.mxu0 0.0
    %332 = vmatprep.subr.mxu0 0.0
    %333 = vmatpush2.msra.mxu0 0.0
    %334 = vmatprep.subr.mxu0 0.0
    %335 = vmatpush2.msra.mxu0 0.0
    %336 = vmatprep.subr.mxu0 0.0
    %337 = vmatpush2.msra.mxu0 0.0
    %338 = vmatprep.subr.mxu0 0.0
    %339 = vmatpush2.msra.mxu0 0.0
    %340 = vmatprep.subr.mxu0 0.0
    %341 = vmatpush2.msra.mxu0 0.0
    %342 = vmatprep.subr.mxu0 0.0
    %343 = vmatpush2.msra.mxu0 0.0
    %344 = vmatprep.subr.mxu0 0.0
    %345 = vmatpush2.msra.mxu0 0.0
    %346 = vmatprep.subr.mxu0 0.0
    %347 = vmatpush2.msra.mxu0 0.0
    %348 = vmatprep.subr.mxu0 0.0
    %349 = vmatpush2.msra.mxu0 0.0
    %350 = vmatprep.subr.mxu0 0.0
    %351 = vmatpush2.msra.mxu0 0.0
    %352 = vmatprep.subr.mxu0 0.0
    %353 = vmatpush2.msra.mxu0 0.0
    %354 = vmatprep.subr.mxu0 0.0
    %355 = vmatpush2.msra.mxu0 0.0
    %356 = vmatprep.mubr.f32.mxu0 0.0
    %357 = vmatmul.mubr.f32.gmra.mxu0 %v268
    %v358 = vpop.f32.mrf.mxu0
    %v359 = vadd.f32 %v290, %v358
    %v360 = vpop.f32.mrf.mxu0
    %361 = vdwg.mxu0
    %362 = vst [vmem:[#allocation10] sm:$0xff] %v359
    // Predicated region
    $region46: #{tpu_custom_call.1} parent=1 // pred_check
      _
    $region47: #{tpu_custom_call.1} parent=1 // pred_check_branch
      %364 = sbr.rel (0) target = $region49
    $region48: #{tpu_custom_call.1} parent=1 // pred_region
      %s366 = ssub.s32 128, 128
      %367 = vsyncadd [#allocation4], %s366
      %s369 = sshll.u32 [#allocation10], 4
      %s370 = int_to_ptr.vmem [resolvable:$true] %s369
      %372 = dma.vmem_to_hbm [thread:$0]  %s370, 128, %s7, [#allocation4]
    $region49: #{tpu_custom_call.1} parent=1 // pred_fallthru
      _
    // Predicated region
    $region50: #{tpu_custom_call.1} parent=1 // pred_check
      _
    $region51: #{tpu_custom_call.1} parent=1 // pred_check_branch
      %374 = sbr.rel (0) target = $region53
    $region52: #{tpu_custom_call.1} parent=1 // pred_region
      %375 = dma.done [#allocation4], 128
    $region53: #{tpu_custom_call.1} parent=1 // pred_fallthru
      _
    %376 = vsyncpa [#allocation3], 1
    %377 = vsyncpa [#allocation6], 1
    %378 = vsyncpa [#allocation9], 1
    %379 = vsyncpa [#allocation4], 1

// kernel: tpu_custom_call.1
$region0: #{tpu_custom_call.1}
  #allocation0 [shape = 'u32[]', space=smem, size = 0x4, offset = 0x4, fixed_abs, tag = 'smem constant byte address 0x4 - core index']
  #allocation1 [shape = 'u32[144,128]{1,0:T(1,128)}', space=vmem, size = 0x12000, scoped, tag = 'internal scratch']
  %s0 = inlined_call_operand.hbm [shape: f32[8,128], index: 0, kind: input, shape index: {}]
  %s1 = inlined_call_operand.hbm [shape: f32[128,128], index: 1, kind: input, shape index: {}]
  %s2 = inlined_call_operand.vmem [shape: f32[1,128], index: 2, kind: input, shape index: {}]
  %s3 = inlined_call_operand.hbm [shape: f32[128,128], index: 3, kind: input, shape index: {}]
  %s4 = inlined_call_operand.vmem [shape: f32[1,128], index: 4, kind: input, shape index: {}]
  %s5 = inlined_call_operand.hbm [shape: f32[128,128], index: 5, kind: input, shape index: {}]
  %s6 = inlined_call_operand.vmem [shape: f32[1,128], index: 6, kind: input, shape index: {}]
  %s7 = inlined_call_operand.hbm [shape: f32[8,128], index: 7, kind: output, shape index: {}]
  %s8 = sld [smem:[#allocation0]]
  $region54: #{tpu_custom_call.1} parent=0
    _
  %s10 = ssub.s32 1, %s8
  %s11 = scalar_select 0, %s10, %s8
  $region1: #{tpu_custom_call.1} parent=0
    #allocation2 [shape = 'u8[4096]{0}', space=vmem, size = 0x1000, scoped, tag = 'input window, operand 0, single buffered']
    #allocation3 [shape = 's32[1]{0}', space=sflag, size = 0x4, scoped, tag = 'scoped memory for tpu_custom_call.1']
    #allocation4 [shape = 's32[1]{0}', space=sflag, size = 0x4, scoped, tag = 'scoped memory for tpu_custom_call.1']
    #allocation5 [shape = 'u8[65536]{0}', space=vmem, size = 0x10000, scoped, tag = 'input window, operand 1, single buffered']
    #allocation6 [shape = 's32[1]{0}', space=sflag, size = 0x4, scoped, tag = 'scoped memory for tpu_custom_call.1']
    #allocation7 [shape = 'u8[65536]{0}', space=vmem, size = 0x10000, scoped, tag = 'input window, operand 3, single buffered']
    #allocation8 [shape = 'u8[65536]{0}', space=vmem, size = 0x10000, scoped, tag = 'input window, operand 5, single buffered']
    #allocation9 [shape = 's32[1]{0}', space=sflag, size = 0x4, scoped, tag = 'scoped memory for tpu_custom_call.1']
    #allocation10 [shape = 'u8[4096]{0}', space=vmem, size = 0x1000, scoped, tag = 'output window, operand 0, single buffered']
    %12 = vsyncpa [#allocation3], 0
    %13 = vsyncpa [#allocation6], 0
    %14 = vsyncpa [#allocation9], 0
    %15 = vsyncpa [#allocation4], 0
    // Predicated region
    $region2: #{tpu_custom_call.1} parent=1 // pred_check
      _
    $region3: #{tpu_custom_call.1} parent=1 // pred_check_branch
      %17 = sbr.rel (0) target = $region5
    $region4: #{tpu_custom_call.1} parent=1 // pred_region
      %s19 = ssub.s32 128, 128
      %20 = vsyncadd [#allocation3], %s19
      %s22 = sshll.u32 [#allocation2], 4
      %s23 = int_to_ptr.vmem [resolvable:$true] %s22
      %25 = dma.hbm_to_vmem [thread:$0]  %s0, 128, %s23, [#allocation3]
    $region5: #{tpu_custom_call.1} parent=1 // pred_fallthru
      _
    // Predicated region
    $region6: #{tpu_custom_call.1} parent=1 // pred_check
      _
    $region7: #{tpu_custom_call.1} parent=1 // pred_check_branch
      %27 = sbr.rel (0) target = $region9
    $region8: #{tpu_custom_call.1} parent=1 // pred_region
      %s29 = ssub.s32 2048, 2048
      %30 = vsyncadd [#allocation6], %s29
      %s31 = sshll.u32 [#allocation5], 4
      %s32 = int_to_ptr.vmem [resolvable:$true] %s31
      %37 = dma.hbm_to_vmem [thread:$0]  %s1, 2048, %s32, [#allocation6], 128, 128, 8
    $region9: #{tpu_custom_call.1} parent=1 // pred_fallthru
      _
    // Predicated region
    $region10: #{tpu_custom_call.1} parent=1 // pred_check
      _
    $region11: #{tpu_custom_call.1} parent=1 // pred_check_branch
      %39 = sbr.rel (0) target = $region13
    $region12: #{tpu_custom_call.1} parent=1 // pred_region
      _
    $region13: #{tpu_custom_call.1} parent=1 // pred_fallthru
      _
    // Predicated region
    $region14: #{tpu_custom_call.1} parent=1 // pred_check
      _
    $region15: #{tpu_custom_call.1} parent=1 // pred_check_branch
      %41 = sbr.rel (0) target = $region17
    $region16: #{tpu_custom_call.1} parent=1 // pred_region
      %s43 = ssub.s32 2048, 2048
      %44 = vsyncadd [#allocation6], %s43
      %s45 = sshll.u32 [#allocation7], 4
      %s46 = int_to_ptr.vmem [resolvable:$true] %s45
      %51 = dma.hbm_to_vmem [thread:$0]  %s3, 2048, %s46, [#allocation6], 128, 128, 8
    $region17: #{tpu_custom_call.1} parent=1 // pred_fallthru
      _
    // Predicated region
    $region18: #{tpu_custom_call.1} parent=1 // pred_check
      _
    $region19: #{tpu_custom_call.1} parent=1 // pred_check_branch
      %53 = sbr.rel (0) target = $region21
    $region20: #{tpu_custom_call.1} parent=1 // pred_region
      _
    $region21: #{tpu_custom_call.1} parent=1 // pred_fallthru
      _
    // Predicated region
    $region22: #{tpu_custom_call.1} parent=1 // pred_check
      _
    $region23: #{tpu_custom_call.1} parent=1 // pred_check_branch
      %55 = sbr.rel (0) target = $region25
    $region24: #{tpu_custom_call.1} parent=1 // pred_region
      %s57 = ssub.s32 2048, 2048
      %58 = vsyncadd [#allocation9], %s57
      %s59 = sshll.u32 [#allocation8], 4
      %s60 = int_to_ptr.vmem [resolvable:$true] %s59
      %65 = dma.hbm_to_vmem [thread:$0]  %s5, 2048, %s60, [#allocation9], 128, 128, 8
    $region25: #{tpu_custom_call.1} parent=1 // pred_fallthru
      _
    // Predicated region
    $region26: #{tpu_custom_call.1} parent=1 // pred_check
      _
    $region27: #{tpu_custom_call.1} parent=1 // pred_check_branch
      %67 = sbr.rel (0) target = $region29
    $region28: #{tpu_custom_call.1} parent=1 // pred_region
      _
    $region29: #{tpu_custom_call.1} parent=1 // pred_fallthru
      _
    // Predicated region
    $region30: #{tpu_custom_call.1} parent=1 // pred_check
      _
    $region31: #{tpu_custom_call.1} parent=1 // pred_check_branch
      %69 = sbr.rel (0) target = $region33
    $region32: #{tpu_custom_call.1} parent=1 // pred_region
      %70 = dma.done [#allocation3], 128
    $region33: #{tpu_custom_call.1} parent=1 // pred_fallthru
      _
    // Predicated region
    $region34: #{tpu_custom_call.1} parent=1 // pred_check
      _
    $region35: #{tpu_custom_call.1} parent=1 // pred_check_branch
      %72 = sbr.rel (0) target = $region37
    $region36: #{tpu_custom_call.1} parent=1 // pred_region
      %73 = dma.done [#allocation6], 2048
    $region37: #{tpu_custom_call.1} parent=1 // pred_fallthru
      _
    // Predicated region
    $region38: #{tpu_custom_call.1} parent=1 // pred_check
      _
    $region39: #{tpu_custom_call.1} parent=1 // pred_check_branch
      %75 = sbr.rel (0) target = $region41
    $region40: #{tpu_custom_call.1} parent=1 // pred_region
      %76 = dma.done [#allocation6], 2048
    $region41: #{tpu_custom_call.1} parent=1 // pred_fallthru
      _
    // Predicated region
    $region42: #{tpu_custom_call.1} parent=1 // pred_check
      _
    $region43: #{tpu_custom_call.1} parent=1 // pred_check_branch
      %78 = sbr.rel (0) target = $region45
    $region44: #{tpu_custom_call.1} parent=1 // pred_region
      %79 = dma.done [#allocation9], 2048
    $region45: #{tpu_custom_call.1} parent=1 // pred_fallthru
      _
    %v80 = vld [vmem:[#allocation2] sm:$0xff]
    %v81 = vld [vmem:[#allocation5] sm:$0xff]
    %v82 = vld [vmem:[#allocation5 + $0x8] sm:$0xff]
    %v83 = vld [vmem:[#allocation5 + $0x10] sm:$0xff]
    %v84 = vld [vmem:[#allocation5 + $0x18] sm:$0xff]
    %v85 = vld [vmem:[#allocation5 + $0x20] sm:$0xff]
    %v86 = vld [vmem:[#allocation5 + $0x28] sm:$0xff]
    %v87 = vld [vmem:[#allocation5 + $0x30] sm:$0xff]
    %v88 = vld [vmem:[#allocation5 + $0x38] sm:$0xff]
    %v89 = vld [vmem:[#allocation5 + $0x40] sm:$0xff]
    %v90 = vld [vmem:[#allocation5 + $0x48] sm:$0xff]
    %v91 = vld [vmem:[#allocation5 + $0x50] sm:$0xff]
    %v92 = vld [vmem:[#allocation5 + $0x58] sm:$0xff]
    %v93 = vld [vmem:[#allocation5 + $0x60] sm:$0xff]
    %v94 = vld [vmem:[#allocation5 + $0x68] sm:$0xff]
    %v95 = vld [vmem:[#allocation5 + $0x70] sm:$0xff]
    %v96 = vld [vmem:[#allocation5 + $0x78] sm:$0xff]
    %v97 = vld [vmem:[%s2] sm:$0x1]
    %v99 = vlaneseq
    %v100 = vshrl.u32 %v99, 7
    %v101 = vsub.s32 0, %v100
    %v102 = vrot.slane %v97, %v101
    %104 = vmatprep.subr.mxu0 0.0
    %105 = vmatpush1.msra.mxu0 %v96
    %106 = vmatprep.subr.mxu0 0.0
    %107 = vmatpush1.msra.mxu0 %v95
    %108 = vmatprep.subr.mxu0 0.0
    %109 = vmatpush1.msra.mxu0 %v94
    %110 = vmatprep.subr.mxu0 0.0
    %111 = vmatpush1.msra.mxu0 %v93
    %112 = vmatprep.subr.mxu0 0.0
    %113 = vmatpush1.msra.mxu0 %v92
    %114 = vmatprep.subr.mxu0 0.0
    %115 = vmatpush1.msra.mxu0 %v91
    %116 = vmatprep.subr.mxu0 0.0
    %117 = vmatpush1.msra.mxu0 %v90
    %118 = vmatprep.subr.mxu0 0.0
    %119 = vmatpush1.msra.mxu0 %v89
    %120 = vmatprep.subr.mxu0 0.0
    %121 = vmatpush1.msra.mxu0 %v88
    %122 = vmatprep.subr.mxu0 0.0
    %123 = vmatpush1.msra.mxu0 %v87
    %124 = vmatprep.subr.mxu0 0.0
    %125 = vmatpush1.msra.mxu0 %v86
    %126 = vmatprep.subr.mxu0 0.0
    %127 = vmatpush1.msra.mxu0 %v85
    %128 = vmatprep.subr.mxu0 0.0
    %129 = vmatpush1.msra.mxu0 %v84
    %130 = vmatprep.subr.mxu0 0.0
    %131 = vmatpush1.msra.mxu0 %v83
    %132 = vmatprep.subr.mxu0 0.0
    %133 = vmatpush1.msra.mxu0 %v82
    %134 = vmatprep.subr.mxu0 0.0
    %135 = vmatpush1.msra.mxu0 %v81
    %136 = vmatprep.subr.mxu0 0.0
    %137 = vmatpush2.msra.mxu0 0.0
    %138 = vmatprep.subr.mxu0 0.0
    %139 = vmatpush2.msra.mxu0 0.0
    %140 = vmatprep.subr.mxu0 0.0
    %141 = vmatpush2.msra.mxu0 0.0
    %142 = vmatprep.subr.mxu0 0.0
    %143 = vmatpush2.msra.mxu0 0.0
    %144 = vmatprep.subr.mxu0 0.0
    %145 = vmatpush2.msra.mxu0 0.0
    %146 = vmatprep.subr.mxu0 0.0
    %147 = vmatpush2.msra.mxu0 0.0
    %148 = vmatprep.subr.mxu0 0.0
    %149 = vmatpush2.msra.mxu0 0.0
    %150 = vmatprep.subr.mxu0 0.0
    %151 = vmatpush2.msra.mxu0 0.0
    %152 = vmatprep.subr.mxu0 0.0
    %153 = vmatpush2.msra.mxu0 0.0
    %154 = vmatprep.subr.mxu0 0.0
    %155 = vmatpush2.msra.mxu0 0.0
    %156 = vmatprep.subr.mxu0 0.0
    %157 = vmatpush2.msra.mxu0 0.0
    %158 = vmatprep.subr.mxu0 0.0
    %159 = vmatpush2.msra.mxu0 0.0
    %160 = vmatprep.subr.mxu0 0.0
    %161 = vmatpush2.msra.mxu0 0.0
    %162 = vmatprep.subr.mxu0 0.0
    %163 = vmatpush2.msra.mxu0 0.0
    %164 = vmatprep.subr.mxu0 0.0
    %165 = vmatpush2.msra.mxu0 0.0
    %166 = vmatprep.subr.mxu0 0.0
    %167 = vmatpush2.msra.mxu0 0.0
    %168 = vmatprep.mubr.f32.mxu0 0.0
    %169 = vmatmul.mubr.f32.gmra.mxu0 %v80
    %v170 = vpop.f32.mrf.mxu0
    %v171 = vadd.f32 %v102, %v170
    %v172 = vpop.f32.mrf.mxu0
    %173 = vdwg.mxu0
    %v174 = vmax.f32 %v171, 0.0
    %v175 = vld [vmem:[#allocation7] sm:$0xff]
    %v176 = vld [vmem:[#allocation7 + $0x8] sm:$0xff]
    %v177 = vld [vmem:[#allocation7 + $0x10] sm:$0xff]
    %v178 = vld [vmem:[#allocation7 + $0x18] sm:$0xff]
    %v179 = vld [vmem:[#allocation7 + $0x20] sm:$0xff]
    %v180 = vld [vmem:[#allocation7 + $0x28] sm:$0xff]
    %v181 = vld [vmem:[#allocation7 + $0x30] sm:$0xff]
    %v182 = vld [vmem:[#allocation7 + $0x38] sm:$0xff]
    %v183 = vld [vmem:[#allocation7 + $0x40] sm:$0xff]
    %v184 = vld [vmem:[#allocation7 + $0x48] sm:$0xff]
    %v185 = vld [vmem:[#allocation7 + $0x50] sm:$0xff]
    %v186 = vld [vmem:[#allocation7 + $0x58] sm:$0xff]
    %v187 = vld [vmem:[#allocation7 + $0x60] sm:$0xff]
    %v188 = vld [vmem:[#allocation7 + $0x68] sm:$0xff]
    %v189 = vld [vmem:[#allocation7 + $0x70] sm:$0xff]
    %v190 = vld [vmem:[#allocation7 + $0x78] sm:$0xff]
    %v191 = vld [vmem:[%s4] sm:$0x1]
    %v193 = vlaneseq
    %v194 = vshrl.u32 %v193, 7
    %v195 = vsub.s32 0, %v194
    %v196 = vrot.slane %v191, %v195
    %198 = vmatprep.subr.mxu0 0.0
    %199 = vmatpush1.msra.mxu0 %v190
    %200 = vmatprep.subr.mxu0 0.0
    %201 = vmatpush1.msra.mxu0 %v189
    %202 = vmatprep.subr.mxu0 0.0
    %203 = vmatpush1.msra.mxu0 %v188
    %204 = vmatprep.subr.mxu0 0.0
    %205 = vmatpush1.msra.mxu0 %v187
    %206 = vmatprep.subr.mxu0 0.0
    %207 = vmatpush1.msra.mxu0 %v186
    %208 = vmatprep.subr.mxu0 0.0
    %209 = vmatpush1.msra.mxu0 %v185
    %210 = vmatprep.subr.mxu0 0.0
    %211 = vmatpush1.msra.mxu0 %v184
    %212 = vmatprep.subr.mxu0 0.0
    %213 = vmatpush1.msra.mxu0 %v183
    %214 = vmatprep.subr.mxu0 0.0
    %215 = vmatpush1.msra.mxu0 %v182
    %216 = vmatprep.subr.mxu0 0.0
    %217 = vmatpush1.msra.mxu0 %v181
    %218 = vmatprep.subr.mxu0 0.0
    %219 = vmatpush1.msra.mxu0 %v180
    %220 = vmatprep.subr.mxu0 0.0
    %221 = vmatpush1.msra.mxu0 %v179
    %222 = vmatprep.subr.mxu0 0.0
    %223 = vmatpush1.msra.mxu0 %v178
    %224 = vmatprep.subr.mxu0 0.0
    %225 = vmatpush1.msra.mxu0 %v177
    %226 = vmatprep.subr.mxu0 0.0
    %227 = vmatpush1.msra.mxu0 %v176
    %228 = vmatprep.subr.mxu0 0.0
    %229 = vmatpush1.msra.mxu0 %v175
    %230 = vmatprep.subr.mxu0 0.0
    %231 = vmatpush2.msra.mxu0 0.0
    %232 = vmatprep.subr.mxu0 0.0
    %233 = vmatpush2.msra.mxu0 0.0
    %234 = vmatprep.subr.mxu0 0.0
    %235 = vmatpush2.msra.mxu0 0.0
    %236 = vmatprep.subr.mxu0 0.0
    %237 = vmatpush2.msra.mxu0 0.0
    %238 = vmatprep.subr.mxu0 0.0
    %239 = vmatpush2.msra.mxu0 0.0
    %240 = vmatprep.subr.mxu0 0.0
    %241 = vmatpush2.msra.mxu0 0.0
    %242 = vmatprep.subr.mxu0 0.0
    %243 = vmatpush2.msra.mxu0 0.0
    %244 = vmatprep.subr.mxu0 0.0
    %245 = vmatpush2.msra.mxu0 0.0
    %246 = vmatprep.subr.mxu0 0.0
    %247 = vmatpush2.msra.mxu0 0.0
    %248 = vmatprep.subr.mxu0 0.0
    %249 = vmatpush2.msra.mxu0 0.0
    %250 = vmatprep.subr.mxu0 0.0
    %251 = vmatpush2.msra.mxu0 0.0
    %252 = vmatprep.subr.mxu0 0.0
    %253 = vmatpush2.msra.mxu0 0.0
    %254 = vmatprep.subr.mxu0 0.0
    %255 = vmatpush2.msra.mxu0 0.0
    %256 = vmatprep.subr.mxu0 0.0
    %257 = vmatpush2.msra.mxu0 0.0
    %258 = vmatprep.subr.mxu0 0.0
    %259 = vmatpush2.msra.mxu0 0.0
    %260 = vmatprep.subr.mxu0 0.0
    %261 = vmatpush2.msra.mxu0 0.0
    %262 = vmatprep.mubr.f32.mxu0 0.0
    %263 = vmatmul.mubr.f32.gmra.mxu0 %v174
    %v264 = vpop.f32.mrf.mxu0
    %v265 = vadd.f32 %v196, %v264
    %v266 = vpop.f32.mrf.mxu0
    %267 = vdwg.mxu0
    %v268 = vmax.f32 %v265, 0.0
    %v269 = vld [vmem:[#allocation8] sm:$0xff]
    %v270 = vld [vmem:[#allocation8 + $0x8] sm:$0xff]
    %v271 = vld [vmem:[#allocation8 + $0x10] sm:$0xff]
    %v272 = vld [vmem:[#allocation8 + $0x18] sm:$0xff]
    %v273 = vld [vmem:[#allocation8 + $0x20] sm:$0xff]
    %v274 = vld [vmem:[#allocation8 + $0x28] sm:$0xff]
    %v275 = vld [vmem:[#allocation8 + $0x30] sm:$0xff]
    %v276 = vld [vmem:[#allocation8 + $0x38] sm:$0xff]
    %v277 = vld [vmem:[#allocation8 + $0x40] sm:$0xff]
    %v278 = vld [vmem:[#allocation8 + $0x48] sm:$0xff]
    %v279 = vld [vmem:[#allocation8 + $0x50] sm:$0xff]
    %v280 = vld [vmem:[#allocation8 + $0x58] sm:$0xff]
    %v281 = vld [vmem:[#allocation8 + $0x60] sm:$0xff]
    %v282 = vld [vmem:[#allocation8 + $0x68] sm:$0xff]
    %v283 = vld [vmem:[#allocation8 + $0x70] sm:$0xff]
    %v284 = vld [vmem:[#allocation8 + $0x78] sm:$0xff]
    %v285 = vld [vmem:[%s6] sm:$0x1]
    %v287 = vlaneseq
    %v288 = vshrl.u32 %v287, 7
    %v289 = vsub.s32 0, %v288
    %v290 = vrot.slane %v285, %v289
    %292 = vmatprep.subr.mxu0 0.0
    %293 = vmatpush1.msra.mxu0 %v284
    %294 = vmatprep.subr.mxu0 0.0
    %295 = vmatpush1.msra.mxu0 %v283
    %296 = vmatprep.subr.mxu0 0.0
    %297 = vmatpush1.msra.mxu0 %v282
    %298 = vmatprep.subr.mxu0 0.0
    %299 = vmatpush1.msra.mxu0 %v281
    %300 = vmatprep.subr.mxu0 0.0
    %301 = vmatpush1.msra.mxu0 %v280
    %302 = vmatprep.subr.mxu0 0.0
    %303 = vmatpush1.msra.mxu0 %v279
    %304 = vmatprep.subr.mxu0 0.0
    %305 = vmatpush1.msra.mxu0 %v278
    %306 = vmatprep.subr.mxu0 0.0
    %307 = vmatpush1.msra.mxu0 %v277
    %308 = vmatprep.subr.mxu0 0.0
    %309 = vmatpush1.msra.mxu0 %v276
    %310 = vmatprep.subr.mxu0 0.0
    %311 = vmatpush1.msra.mxu0 %v275
    %312 = vmatprep.subr.mxu0 0.0
    %313 = vmatpush1.msra.mxu0 %v274
    %314 = vmatprep.subr.mxu0 0.0
    %315 = vmatpush1.msra.mxu0 %v273
    %316 = vmatprep.subr.mxu0 0.0
    %317 = vmatpush1.msra.mxu0 %v272
    %318 = vmatprep.subr.mxu0 0.0
    %319 = vmatpush1.msra.mxu0 %v271
    %320 = vmatprep.subr.mxu0 0.0
    %321 = vmatpush1.msra.mxu0 %v270
    %322 = vmatprep.subr.mxu0 0.0
    %323 = vmatpush1.msra.mxu0 %v269
    %324 = vmatprep.subr.mxu0 0.0
    %325 = vmatpush2.msra.mxu0 0.0
    %326 = vmatprep.subr.mxu0 0.0
    %327 = vmatpush2.msra.mxu0 0.0
    %328 = vmatprep.subr.mxu0 0.0
    %329 = vmatpush2.msra.mxu0 0.0
    %330 = vmatprep.subr.mxu0 0.0
    %331 = vmatpush2.msra.mxu0 0.0
    %332 = vmatprep.subr.mxu0 0.0
    %333 = vmatpush2.msra.mxu0 0.0
    %334 = vmatprep.subr.mxu0 0.0
    %335 = vmatpush2.msra.mxu0 0.0
    %336 = vmatprep.subr.mxu0 0.0
    %337 = vmatpush2.msra.mxu0 0.0
    %338 = vmatprep.subr.mxu0 0.0
    %339 = vmatpush2.msra.mxu0 0.0
    %340 = vmatprep.subr.mxu0 0.0
    %341 = vmatpush2.msra.mxu0 0.0
    %342 = vmatprep.subr.mxu0 0.0
    %343 = vmatpush2.msra.mxu0 0.0
    %344 = vmatprep.subr.mxu0 0.0
    %345 = vmatpush2.msra.mxu0 0.0
    %346 = vmatprep.subr.mxu0 0.0
    %347 = vmatpush2.msra.mxu0 0.0
    %348 = vmatprep.subr.mxu0 0.0
    %349 = vmatpush2.msra.mxu0 0.0
    %350 = vmatprep.subr.mxu0 0.0
    %351 = vmatpush2.msra.mxu0 0.0
    %352 = vmatprep.subr.mxu0 0.0
    %353 = vmatpush2.msra.mxu0 0.0
    %354 = vmatprep.subr.mxu0 0.0
    %355 = vmatpush2.msra.mxu0 0.0
    %356 = vmatprep.mubr.f32.mxu0 0.0
    %357 = vmatmul.mubr.f32.gmra.mxu0 %v268
    %v358 = vpop.f32.mrf.mxu0
    %v359 = vadd.f32 %v290, %v358
    %v360 = vpop.f32.mrf.mxu0
    %361 = vdwg.mxu0
    %362 = vst [vmem:[#allocation10] sm:$0xff] %v359
    // Predicated region
    $region46: #{tpu_custom_call.1} parent=1 // pred_check
      _
    $region47: #{tpu_custom_call.1} parent=1 // pred_check_branch
      %364 = sbr.rel (0) target = $region49
    $region48: #{tpu_custom_call.1} parent=1 // pred_region
      %s366 = ssub.s32 128, 128
      %367 = vsyncadd [#allocation4], %s366
      %s369 = sshll.u32 [#allocation10], 4
      %s370 = int_to_ptr.vmem [resolvable:$true] %s369
      %372 = dma.vmem_to_hbm [thread:$0]  %s370, 128, %s7, [#allocation4]
    $region49: #{tpu_custom_call.1} parent=1 // pred_fallthru
      _
    // Predicated region
    $region50: #{tpu_custom_call.1} parent=1 // pred_check
      _
    $region51: #{tpu_custom_call.1} parent=1 // pred_check_branch
      %374 = sbr.rel (0) target = $region53
    $region52: #{tpu_custom_call.1} parent=1 // pred_region
      %375 = dma.done [#allocation4], 128
    $region53: #{tpu_custom_call.1} parent=1 // pred_fallthru
      _
    %376 = vsyncpa [#allocation3], 1
    %377 = vsyncpa [#allocation6], 1
    %378 = vsyncpa [#allocation9], 1
    %379 = vsyncpa [#allocation4], 1

// kernel: tpu_custom_call.1
$region0: #{tpu_custom_call.1}
  #allocation0 [shape = 'u32[]', space=smem, size = 0x4, offset = 0x4, fixed_abs, tag = 'smem constant byte address 0x4 - core index']
  #allocation1 [shape = 'u32[144,128]{1,0:T(1,128)}', space=vmem, size = 0x12000, scoped, tag = 'internal scratch']
  #allocation2 [shape = 'f32[8,128]{1,0:T(8,128)}', space=vmem, size = 0x1000, scoped, tag = 'scratch operand']
  %s0 = inlined_call_operand.hbm [shape: f32[8,128], index: 0, kind: input, shape index: {}]
  %s1 = inlined_call_operand.hbm [shape: f32[128,128], index: 1, kind: input, shape index: {}]
  %s2 = inlined_call_operand.vmem [shape: f32[1,128], index: 2, kind: input, shape index: {}]
  %s3 = inlined_call_operand.hbm [shape: f32[8,128], index: 3, kind: output, shape index: {}]
  %s4 = sld [smem:[#allocation0]]
  $region38: #{tpu_custom_call.1} parent=0
    _
  %s6 = ssub.s32 1, %s4
  %s7 = scalar_select 0, %s6, %s4
  $region1: #{tpu_custom_call.1} parent=0
    #allocation3 [shape = 'u8[4096]{0}', space=vmem, size = 0x1000, scoped, tag = 'input window, operand 0, single buffered']
    #allocation4 [shape = 's32[1]{0}', space=sflag, size = 0x4, scoped, tag = 'scoped memory for tpu_custom_call.1']
    #allocation5 [shape = 's32[1]{0}', space=sflag, size = 0x4, scoped, tag = 'scoped memory for tpu_custom_call.1']
    #allocation6 [shape = 'u8[65536]{0}', space=vmem, size = 0x10000, scoped, tag = 'input window, operand 1, single buffered']
    #allocation7 [shape = 's32[1]{0}', space=sflag, size = 0x4, scoped, tag = 'scoped memory for tpu_custom_call.1']
    #allocation8 [shape = 'u8[4096]{0}', space=vmem, size = 0x1000, scoped, tag = 'output window, operand 0, single buffered']
    %8 = vsyncpa [#allocation4], 0
    %9 = vsyncpa [#allocation7], 0
    %10 = vsyncpa [#allocation5], 0
    // Predicated region
    $region2: #{tpu_custom_call.1} parent=1 // pred_check
      _
    $region3: #{tpu_custom_call.1} parent=1 // pred_check_branch
      %12 = sbr.rel (0) target = $region5
    $region4: #{tpu_custom_call.1} parent=1 // pred_region
      %s14 = ssub.s32 128, 128
      %15 = vsyncadd [#allocation4], %s14
      %s17 = sshll.u32 [#allocation3], 4
      %s18 = int_to_ptr.vmem [resolvable:$true] %s17
      %20 = dma.hbm_to_vmem [thread:$0]  %s0, 128, %s18, [#allocation4]
    $region5: #{tpu_custom_call.1} parent=1 // pred_fallthru
      _
    // Predicated region
    $region6: #{tpu_custom_call.1} parent=1 // pred_check
      _
    $region7: #{tpu_custom_call.1} parent=1 // pred_check_branch
      %22 = sbr.rel (0) target = $region9
    $region8: #{tpu_custom_call.1} parent=1 // pred_region
      %s24 = ssub.s32 2048, 2048
      %25 = vsyncadd [#allocation7], %s24
      %s26 = sshll.u32 [#allocation6], 4
      %s27 = int_to_ptr.vmem [resolvable:$true] %s26
      %32 = dma.hbm_to_vmem [thread:$0]  %s1, 2048, %s27, [#allocation7], 128, 128, 8
    $region9: #{tpu_custom_call.1} parent=1 // pred_fallthru
      _
    // Predicated region
    $region10: #{tpu_custom_call.1} parent=1 // pred_check
      _
    $region11: #{tpu_custom_call.1} parent=1 // pred_check_branch
      %34 = sbr.rel (0) target = $region13
    $region12: #{tpu_custom_call.1} parent=1 // pred_region
      _
    $region13: #{tpu_custom_call.1} parent=1 // pred_fallthru
      _
    // Predicated region
    $region14: #{tpu_custom_call.1} parent=1 // pred_check
      _
    $region15: #{tpu_custom_call.1} parent=1 // pred_check_branch
      %36 = sbr.rel (0) target = $region17
    $region16: #{tpu_custom_call.1} parent=1 // pred_region
      %37 = dma.done [#allocation4], 128
    $region17: #{tpu_custom_call.1} parent=1 // pred_fallthru
      _
    // Predicated region
    $region18: #{tpu_custom_call.1} parent=1 // pred_check
      _
    $region19: #{tpu_custom_call.1} parent=1 // pred_check_branch
      %39 = sbr.rel (0) target = $region21
    $region20: #{tpu_custom_call.1} parent=1 // pred_region
      %40 = dma.done [#allocation7], 2048
    $region21: #{tpu_custom_call.1} parent=1 // pred_fallthru
      _
    %p41 = scmp.eq.s32.totalorder 0, 0
    // Predicated region
    $region22: #{tpu_custom_call.1} parent=1 // pred_check
      %p42 = pneg %p41
    $region23: #{tpu_custom_call.1} parent=1 // pred_check_branch
      %44 = sbr.rel (%p42) target = $region25
    $region24: #{tpu_custom_call.1} parent=1 // pred_region
      %45 = vst [vmem:[#allocation2] sm:$0xff] 0.0
    $region25: #{tpu_custom_call.1} parent=1 // pred_fallthru
      _
    %v46 = vld [vmem:[#allocation2] sm:$0xff]
    %v47 = vld [vmem:[#allocation3] sm:$0xff]
    %v48 = vld [vmem:[#allocation6] sm:$0xff]
    %v49 = vld [vmem:[#allocation6 + $0x8] sm:$0xff]
    %v50 = vld [vmem:[#allocation6 + $0x10] sm:$0xff]
    %v51 = vld [vmem:[#allocation6 + $0x18] sm:$0xff]
    %v52 = vld [vmem:[#allocation6 + $0x20] sm:$0xff]
    %v53 = vld [vmem:[#allocation6 + $0x28] sm:$0xff]
    %v54 = vld [vmem:[#allocation6 + $0x30] sm:$0xff]
    %v55 = vld [vmem:[#allocation6 + $0x38] sm:$0xff]
    %v56 = vld [vmem:[#allocation6 + $0x40] sm:$0xff]
    %v57 = vld [vmem:[#allocation6 + $0x48] sm:$0xff]
    %v58 = vld [vmem:[#allocation6 + $0x50] sm:$0xff]
    %v59 = vld [vmem:[#allocation6 + $0x58] sm:$0xff]
    %v60 = vld [vmem:[#allocation6 + $0x60] sm:$0xff]
    %v61 = vld [vmem:[#allocation6 + $0x68] sm:$0xff]
    %v62 = vld [vmem:[#allocation6 + $0x70] sm:$0xff]
    %v63 = vld [vmem:[#allocation6 + $0x78] sm:$0xff]
    %64 = vmatprep.subr.mxu0 0.0
    %65 = vmatpush1.msra.mxu0 %v63
    %66 = vmatprep.subr.mxu0 0.0
    %67 = vmatpush1.msra.mxu0 %v62
    %68 = vmatprep.subr.mxu0 0.0
    %69 = vmatpush1.msra.mxu0 %v61
    %70 = vmatprep.subr.mxu0 0.0
    %71 = vmatpush1.msra.mxu0 %v60
    %72 = vmatprep.subr.mxu0 0.0
    %73 = vmatpush1.msra.mxu0 %v59
    %74 = vmatprep.subr.mxu0 0.0
    %75 = vmatpush1.msra.mxu0 %v58
    %76 = vmatprep.subr.mxu0 0.0
    %77 = vmatpush1.msra.mxu0 %v57
    %78 = vmatprep.subr.mxu0 0.0
    %79 = vmatpush1.msra.mxu0 %v56
    %80 = vmatprep.subr.mxu0 0.0
    %81 = vmatpush1.msra.mxu0 %v55
    %82 = vmatprep.subr.mxu0 0.0
    %83 = vmatpush1.msra.mxu0 %v54
    %84 = vmatprep.subr.mxu0 0.0
    %85 = vmatpush1.msra.mxu0 %v53
    %86 = vmatprep.subr.mxu0 0.0
    %87 = vmatpush1.msra.mxu0 %v52
    %88 = vmatprep.subr.mxu0 0.0
    %89 = vmatpush1.msra.mxu0 %v51
    %90 = vmatprep.subr.mxu0 0.0
    %91 = vmatpush1.msra.mxu0 %v50
    %92 = vmatprep.subr.mxu0 0.0
    %93 = vmatpush1.msra.mxu0 %v49
    %94 = vmatprep.subr.mxu0 0.0
    %95 = vmatpush1.msra.mxu0 %v48
    %96 = vmatprep.subr.mxu0 0.0
    %97 = vmatpush2.msra.mxu0 0.0
    %98 = vmatprep.subr.mxu0 0.0
    %99 = vmatpush2.msra.mxu0 0.0
    %100 = vmatprep.subr.mxu0 0.0
    %101 = vmatpush2.msra.mxu0 0.0
    %102 = vmatprep.subr.mxu0 0.0
    %103 = vmatpush2.msra.mxu0 0.0
    %104 = vmatprep.subr.mxu0 0.0
    %105 = vmatpush2.msra.mxu0 0.0
    %106 = vmatprep.subr.mxu0 0.0
    %107 = vmatpush2.msra.mxu0 0.0
    %108 = vmatprep.subr.mxu0 0.0
    %109 = vmatpush2.msra.mxu0 0.0
    %110 = vmatprep.subr.mxu0 0.0
    %111 = vmatpush2.msra.mxu0 0.0
    %112 = vmatprep.subr.mxu0 0.0
    %113 = vmatpush2.msra.mxu0 0.0
    %114 = vmatprep.subr.mxu0 0.0
    %115 = vmatpush2.msra.mxu0 0.0
    %116 = vmatprep.subr.mxu0 0.0
    %117 = vmatpush2.msra.mxu0 0.0
    %118 = vmatprep.subr.mxu0 0.0
    %119 = vmatpush2.msra.mxu0 0.0
    %120 = vmatprep.subr.mxu0 0.0
    %121 = vmatpush2.msra.mxu0 0.0
    %122 = vmatprep.subr.mxu0 0.0
    %123 = vmatpush2.msra.mxu0 0.0
    %124 = vmatprep.subr.mxu0 0.0
    %125 = vmatpush2.msra.mxu0 0.0
    %126 = vmatprep.subr.mxu0 0.0
    %127 = vmatpush2.msra.mxu0 0.0
    %128 = vmatprep.mubr.f32.mxu0 0.0
    %129 = vmatmul.mubr.f32.gmra.mxu0 %v47
    %v130 = vpop.f32.mrf.mxu0
    %v131 = vadd.f32 0.0, %v130
    %v132 = vpop.f32.mrf.mxu0
    %133 = vdwg.mxu0
    %v134 = vadd.f32 %v46, %v131
    %135 = vst [vmem:[#allocation2] sm:$0xff] %v134
    // Predicated region
    $region26: #{tpu_custom_call.1} parent=1 // pred_check
      %p136 = pneg %p41
    $region27: #{tpu_custom_call.1} parent=1 // pred_check_branch
      %138 = sbr.rel (%p136) target = $region29
    $region28: #{tpu_custom_call.1} parent=1 // pred_region
      %v139 = vld [vmem:[#allocation2] sm:$0xff]
      %v140 = vld [vmem:[%s2] sm:$0x1]
      %v142 = vlaneseq
      %v143 = vshrl.u32 %v142, 7
      %v144 = vsub.s32 0, %v143
      %v145 = vrot.slane %v140, %v144
      %v147 = vadd.f32 %v139, %v145
      %v148 = vmax.f32 %v147, 0.0
      %149 = vst [vmem:[#allocation8] sm:$0xff] %v148
    $region29: #{tpu_custom_call.1} parent=1 // pred_fallthru
      _
    // Predicated region
    $region30: #{tpu_custom_call.1} parent=1 // pred_check
      _
    $region31: #{tpu_custom_call.1} parent=1 // pred_check_branch
      %151 = sbr.rel (0) target = $region33
    $region32: #{tpu_custom_call.1} parent=1 // pred_region
      %s153 = ssub.s32 128, 128
      %154 = vsyncadd [#allocation5], %s153
      %s156 = sshll.u32 [#allocation8], 4
      %s157 = int_to_ptr.vmem [resolvable:$true] %s156
      %159 = dma.vmem_to_hbm [thread:$0]  %s157, 128, %s3, [#allocation5]
    $region33: #{tpu_custom_call.1} parent=1 // pred_fallthru
      _
    // Predicated region
    $region34: #{tpu_custom_call.1} parent=1 // pred_check
      _
    $region35: #{tpu_custom_call.1} parent=1 // pred_check_branch
      %161 = sbr.rel (0) target = $region37
    $region36: #{tpu_custom_call.1} parent=1 // pred_region
      %162 = dma.done [#allocation5], 128
    $region37: #{tpu_custom_call.1} parent=1 // pred_fallthru
      _
    %163 = vsyncpa [#allocation4], 1
    %164 = vsyncpa [#allocation7], 1
    %165 = vsyncpa [#allocation5], 1

</llo_original>
